<compile_context>
chip_gen: v5e
topology: v5e:2x2
jax: 0.10.0
libtpu: 0.0.40
codegen_flags: <defaults>
</compile_context>

<pallas_src>
import jax
import jax.numpy as jnp
import numpy as np
from jax.experimental import pallas as pl
from jax.experimental.pallas import tpu as pltpu


# ----------------------------------------------------------------------------
# In-kernel helpers. Activations are (C, H*W): channels in sublanes, flattened
# row-major spatial (h, w) in lanes. All spatial sizes are static (powers of 2).
# ----------------------------------------------------------------------------
def _bool_to(cond, dtype):
    """Select 1/0 in `dtype` (avoids bool->float convert lowering issues)."""
    return jnp.where(cond, jnp.ones(cond.shape, dtype), jnp.zeros(cond.shape, dtype))


def _conv3x3_lrelu(x, H, W, w_ref, b_ref, compute_dtype):
    """3x3 stride-1 'same' conv + LeakyReLU(0.2) as 9 shifted MXU dots.

    x:      (Cin, H*W) float32 activation (spatial in lanes)
    w_ref:  (9, Cout, Cin) ref, tap t = (di+1)*3 + (dj+1)
    b_ref:  (Cout, 1) float32 ref
    returns (Cout, H*W) float32
    """
    Cin, HW = x.shape
    Cout = w_ref.shape[1]
    assert HW == H * W and (W & (W - 1)) == 0  # W is a power of two here

    w_all = w_ref[...]                                   # (9, Cout, Cin) compute_dtype
    b = b_ref[...]                                       # (Cout, 1) f32

    xw = x.astype(compute_dtype)
    pad = jnp.zeros((Cin, W + 1), compute_dtype)
    # Padded flat buffer: xp[:, (W+1) + p] = x[:, p].  A tap offset of
    # di*W + dj is then a single static lane slice; vertical out-of-range rows
    # read the zero pad, horizontal wrap is killed by the column masks below.
    xp = jnp.concatenate([pad, xw, pad], axis=1)         # (Cin, HW + 2W + 2)

    col = jax.lax.broadcasted_iota(jnp.int32, (1, HW), 1) & (W - 1)
    mask_l = _bool_to(col != 0, compute_dtype)           # zero first column (dj = -1)
    mask_r = _bool_to(col != W - 1, compute_dtype)       # zero last column  (dj = +1)

    acc = jnp.zeros((Cout, HW), jnp.float32)
    for di in (-1, 0, 1):
        for dj in (-1, 0, 1):
            t = (di + 1) * 3 + (dj + 1)
            start = (W + 1) + di * W + dj                # static slice start
            xt = xp[:, start:start + HW]                 # (Cin, HW)
            if dj == -1:
                xt = xt * mask_l
            elif dj == 1:
                xt = xt * mask_r
            acc = acc + jnp.dot(w_all[t], xt, preferred_element_type=jnp.float32)

    y = acc + b
    return jnp.maximum(y, 0.2 * y)                       # LeakyReLU(0.2)


def _upsample2x_nearest(x, H, W, compute_dtype):
    """Nearest-neighbor 2x upsample as one MXU matmul vs. a 0/1 expansion matrix.

    x: (C, H*W) -> (C, 4*H*W), row-major over the (2H, 2W) output grid.
    The expansion matrix is built from iota (no dense constants embedded).
    """
    C, HW = x.shape
    HW2 = 4 * HW
    lw = W.bit_length() - 1                              # log2(W)
    lw2 = lw + 1                                         # log2(2W)
    p = jax.lax.broadcasted_iota(jnp.int32, (HW, HW2), 0)
    q = jax.lax.broadcasted_iota(jnp.int32, (HW, HW2), 1)
    qh = q >> lw2                                        # output row
    qw = q & (2 * W - 1)                                 # output col
    src = ((qh >> 1) << lw) + (qw >> 1)                  # source flat index
    expand = _bool_to(p == src, compute_dtype)           # (HW, 4HW)
    return jnp.dot(x.astype(compute_dtype), expand, preferred_element_type=jnp.float32)


# ----------------------------------------------------------------------------
# Fused Generator kernel (built per static level / phase / dtype configuration).
# ----------------------------------------------------------------------------
def _build_generator_kernel(current_level, transition_phase, compute_dtype):
    L = current_level

    def kernel(*refs):
        pos = 0
        if transition_phase:
            alpha_ref = refs[pos]                        # (1,1) f32 in SMEM
            pos += 1
        x_ref = refs[pos]
        pos += 1
        out_ref = refs[-1]
        prm = refs[pos:-1]
        n_blk = 4 * (L + 1)

        x = x_ref[0]                                     # (c0, 16) f32
        H = W = 4
        lr = None
        lr_hw = None
        for i in range(L + 1):
            if i != 0:
                x = _upsample2x_nearest(x, H, W, compute_dtype)
                H, W = 2 * H, 2 * W
            x = _conv3x3_lrelu(x, H, W, prm[4 * i], prm[4 * i + 1], compute_dtype)
            x = _conv3x3_lrelu(x, H, W, prm[4 * i + 2], prm[4 * i + 3], compute_dtype)
            if transition_phase and i == L - 1:
                # Apply to_rgb[L-1] immediately: only (3, HW) stays live.
                w_lo = prm[n_blk + 2][...]               # (3, C_{L-1})
                b_lo = prm[n_blk + 3][...]               # (3, 1)
                lr = jnp.dot(w_lo, x.astype(compute_dtype),
                             preferred_element_type=jnp.float32) + b_lo
                if L - 1 >= 1:                           # to_rgb_layers[0] has no Tanh
                    lr = jnp.tanh(lr)
                lr_hw = (H, W)

        w_rgb = prm[n_blk][...]                          # (3, C_L)
        b_rgb = prm[n_blk + 1][...]                      # (3, 1)
        hr = jnp.dot(w_rgb, x.astype(compute_dtype),
                     preferred_element_type=jnp.float32) + b_rgb
        if L >= 1:
            hr = jnp.tanh(hr)

        if transition_phase:
            alpha = alpha_ref[0, 0]                      # runtime scalar (no retrace)
            lr_up = _upsample2x_nearest(lr, lr_hw[0], lr_hw[1], compute_dtype)
            out = alpha * hr + (1.0 - alpha) * lr_up
        else:
            out = hr

        out_ref[0] = out.astype(out_ref.dtype)           # (3, S*S), lane-dense

    return kernel


# ----------------------------------------------------------------------------
# Wrapper (mirrors Generator.forward exactly).
# ----------------------------------------------------------------------------
def _conv_w_taps(w_hwio):
    """(3,3,Cin,Cout) HWIO -> (9, Cout, Cin), tap t = i*3 + j."""
    kh, kw, cin, cout = w_hwio.shape
    return w_hwio.reshape(kh * kw, cin, cout).transpose(0, 2, 1)


def generator_forward(z, params, *, current_level, transition_phase=False, alpha=None,
                      compute_dtype=jnp.bfloat16):
    """z: (N, z_size). Returns NCHW (N, 3, S, S) with S = 4 * 2**current_level."""
    if transition_phase:
        assert current_level >= 1 and alpha is not None
    N = z.shape[0]
    c0 = params["c_in0"]
    L = current_level
    S = 4 * (2 ** L)

    # input.view(N, -1, 4, 4) with channels in sublanes, flat (h,w) in lanes.
    x = z.reshape(N, c0, 16).astype(jnp.float32)

    inputs = []
    in_specs = []

    if transition_phase:
        inputs.append(jnp.full((1, 1), alpha, jnp.float32))
        in_specs.append(pl.BlockSpec(memory_space=pltpu.MemorySpace.SMEM))

    inputs.append(x)
    in_specs.append(pl.BlockSpec((1, c0, 16), lambda n: (n, 0, 0)))

    def add_param(arr, dtype):
        arr = jnp.asarray(arr, dtype)
        zeros = (0,) * arr.ndim
        inputs.append(arr)
        in_specs.append(pl.BlockSpec(arr.shape, lambda n, _z=zeros: _z))

    for i in range(L + 1):
        (w1, b1), (w2, b2) = params["blocks"][i]
        add_param(_conv_w_taps(w1), compute_dtype)       # (9, Cout, Cin)
        add_param(b1.reshape(-1, 1), jnp.float32)        # (Cout, 1)
        add_param(_conv_w_taps(w2), compute_dtype)
        add_param(b2.reshape(-1, 1), jnp.float32)

    w_rgb, b_rgb = params["to_rgb"][L]
    add_param(w_rgb.reshape(w_rgb.shape[2], 3).T, compute_dtype)   # (3, C_L)
    add_param(b_rgb.reshape(3, 1), jnp.float32)
    if transition_phase:
        w_lo, b_lo = params["to_rgb"][L - 1]
        add_param(w_lo.reshape(w_lo.shape[2], 3).T, compute_dtype)
        add_param(b_lo.reshape(3, 1), jnp.float32)

    kernel = _build_generator_kernel(L, transition_phase, compute_dtype)
    out = pl.pallas_call(
        kernel,
        out_shape=jax.ShapeDtypeStruct((N, 3, S * S), jnp.float32),
        grid=(N,),
        in_specs=in_specs,
        out_specs=pl.BlockSpec((1, 3, S * S), lambda n: (n, 0, 0)),
        compiler_params=pltpu.CompilerParams(dimension_semantics=("parallel",)),
    )(*inputs)
    return out.reshape(N, 3, S, S)                       # free reshape (already NCHW order)


# ----------------------------------------------------------------------------
# Deterministic parameter construction (HWIO conv weights, same structure as
# the torch module: blocks[i] = (conv3x3, conv3x3); to_rgb[i] = conv1x1).
# ----------------------------------------------------------------------------
def init_params(key, z_size, depth_modifier, depth_levels):
    c_in0 = z_size // 4 ** 2
    chans = [depth_modifier * d for d in depth_levels]
    keys = iter(jax.random.split(key, 6 * len(depth_levels)))

    def conv_init(kh, kw, cin, cout):
        w = 0.1 * jax.random.normal(next(keys), (kh, kw, cin, cout), jnp.float32)
        b = 0.01 * jax.random.normal(next(keys), (cout,), jnp.float32)
        return w, b

    blocks, to_rgb = [], []
    prev = c_in0
    for c in chans:
        blocks.append((conv_init(3, 3, prev, c), conv_init(3, 3, c, c)))
        to_rgb.append(conv_init(1, 1, c, 3))
        prev = c
    return {"c_in0": c_in0, "blocks": blocks, "to_rgb": to_rgb}


# ----------------------------------------------------------------------------
# Pure-JAX reference (for correctness check only).
# ----------------------------------------------------------------------------
def _ref_conv(x_nhwc, w_hwio, b, pad):
    y = jax.lax.conv_general_dilated(
        x_nhwc, w_hwio, window_strides=(1, 1),
        padding=[(pad, pad), (pad, pad)],
        dimension_numbers=("NHWC", "HWIO", "NHWC"))
    return y + b


def _ref_forward(z, params, *, current_level, transition_phase=False, alpha=None):
    N = z.shape[0]
    c0 = params["c_in0"]
    x = z.reshape(N, c0, 4, 4).transpose(0, 2, 3, 1).astype(jnp.float32)
    inter = []
    for i in range(current_level + 1):
        if i != 0:
            x = jnp.repeat(jnp.repeat(x, 2, axis=1), 2, axis=2)
        (w1, b1), (w2, b2) = params["blocks"][i]
        x = _ref_conv(x, w1, b1, 1); x = jnp.where(x > 0, x, 0.2 * x)
        x = _ref_conv(x, w2, b2, 1); x = jnp.where(x > 0, x, 0.2 * x)
        inter.append(x)
    w, b = params["to_rgb"][current_level]
    hr = _ref_conv(inter[-1], w, b, 0)
    if current_level >= 1:
        hr = jnp.tanh(hr)
    if not transition_phase:
        out = hr
    else:
        w2_, b2_ = params["to_rgb"][current_level - 1]
        lr = _ref_conv(inter[-2], w2_, b2_, 0)
        if current_level - 1 >= 1:
            lr = jnp.tanh(lr)
        lr = jnp.repeat(jnp.repeat(lr, 2, axis=1), 2, axis=2)
        out = alpha * hr + (1 - alpha) * lr
    return out.transpose(0, 3, 1, 2)


# ----------------------------------------------------------------------------
if __name__ == "__main__":
    key = jax.random.PRNGKey(0)
    z_size = 32                      # -> z.view(N, 2, 4, 4)
    depth_modifier = 4
    resolution_levels = [4, 8]       # ctor arg only; not used by the forward math
    depth_levels = [2, 4]            # channels: level0 -> 8, level1 -> 16

    k_params, k_z = jax.random.split(key)
    params = init_params(k_params, z_size, depth_modifier, depth_levels)
    z = jax.random.normal(k_z, (2, z_size), jnp.float32)

    # --- strict checks with f32 matmuls ---
    out = generator_forward(z, params, current_level=1, transition_phase=False,
                            compute_dtype=jnp.float32)
    out = jax.block_until_ready(out)
    assert out.shape == (2, 3, 8, 8), out.shape
    ref = _ref_forward(z, params, current_level=1, transition_phase=False)
    np.testing.assert_allclose(np.asarray(out), np.asarray(ref), atol=2e-3, rtol=2e-3)

    out_t = generator_forward(z, params, current_level=1, transition_phase=True,
                              alpha=0.3, compute_dtype=jnp.float32)
    out_t = jax.block_until_ready(out_t)
    assert out_t.shape == (2, 3, 8, 8), out_t.shape
    ref_t = _ref_forward(z, params, current_level=1, transition_phase=True, alpha=0.3)
    np.testing.assert_allclose(np.asarray(out_t), np.asarray(ref_t), atol=2e-3, rtol=2e-3)

    out0 = generator_forward(z, params, current_level=0, transition_phase=False,
                             compute_dtype=jnp.float32)
    out0 = jax.block_until_ready(out0)
    assert out0.shape == (2, 3, 4, 4), out0.shape
    ref0 = _ref_forward(z, params, current_level=0, transition_phase=False)
    np.testing.assert_allclose(np.asarray(out0), np.asarray(ref0), atol=2e-3, rtol=2e-3)

    # --- default bf16-matmul fast path (v6e/v7x MXU rate), loose tolerance ---
    out_bf = generator_forward(z, params, current_level=1, transition_phase=True, alpha=0.7)
    out_bf = jax.block_until_ready(out_bf)
    assert out_bf.shape == (2, 3, 8, 8), out_bf.shape
    ref_bf = _ref_forward(z, params, current_level=1, transition_phase=True, alpha=0.7)
    np.testing.assert_allclose(np.asarray(out_bf), np.asarray(ref_bf), atol=5e-2, rtol=5e-2)

    print("KERNEL_OK")
</pallas_src>

<mosaic_0001>
module attributes {stable_mosaic.version = 11 : i64} {
  func.func @kernel(%arg0: i32, %arg1: memref<1x2x16xf32, #tpu.memory_space<vmem>>, %arg2: memref<9x8x2xf32, #tpu.memory_space<vmem>>, %arg3: memref<8x1xf32, #tpu.memory_space<vmem>>, %arg4: memref<9x8x8xf32, #tpu.memory_space<vmem>>, %arg5: memref<8x1xf32, #tpu.memory_space<vmem>>, %arg6: memref<9x16x8xf32, #tpu.memory_space<vmem>>, %arg7: memref<16x1xf32, #tpu.memory_space<vmem>>, %arg8: memref<9x16x16xf32, #tpu.memory_space<vmem>>, %arg9: memref<16x1xf32, #tpu.memory_space<vmem>>, %arg10: memref<3x16xf32, #tpu.memory_space<vmem>>, %arg11: memref<3x1xf32, #tpu.memory_space<vmem>>, %arg12: memref<1x3x64xf32, #tpu.memory_space<vmem>>) attributes {dimension_semantics = [#tpu.dimension_semantics<parallel>], iteration_bounds = array<i64: 2>, scalar_prefetch = 0 : i64, scratch_operands = 0 : i64, tpu.core_type = #tpu.core_type<tc>, window_params = [{transform_indices = @transform_0, window_bounds = array<i64: 1, 2, 16>}, {pipeline_mode = #tpu.pipeline_mode<synchronous>, transform_indices = @transform_1, window_bounds = array<i64: 9, 8, 2>}, {pipeline_mode = #tpu.pipeline_mode<synchronous>, transform_indices = @transform_2, window_bounds = array<i64: 8, 1>}, {pipeline_mode = #tpu.pipeline_mode<synchronous>, transform_indices = @transform_3, window_bounds = array<i64: 9, 8, 8>}, {pipeline_mode = #tpu.pipeline_mode<synchronous>, transform_indices = @transform_4, window_bounds = array<i64: 8, 1>}, {pipeline_mode = #tpu.pipeline_mode<synchronous>, transform_indices = @transform_5, window_bounds = array<i64: 9, 16, 8>}, {pipeline_mode = #tpu.pipeline_mode<synchronous>, transform_indices = @transform_6, window_bounds = array<i64: 16, 1>}, {pipeline_mode = #tpu.pipeline_mode<synchronous>, transform_indices = @transform_7, window_bounds = array<i64: 9, 16, 16>}, {pipeline_mode = #tpu.pipeline_mode<synchronous>, transform_indices = @transform_8, window_bounds = array<i64: 16, 1>}, {pipeline_mode = #tpu.pipeline_mode<synchronous>, transform_indices = @transform_9, window_bounds = array<i64: 3, 16>}, {pipeline_mode = #tpu.pipeline_mode<synchronous>, transform_indices = @transform_10, window_bounds = array<i64: 3, 1>}, {transform_indices = @transform_11, window_bounds = array<i64: 1, 3, 64>}]} {
    %c0 = arith.constant 0 : index
    %c0_0 = arith.constant 0 : index
    %c0_1 = arith.constant 0 : index
    %0 = vector.load %arg1[%c0, %c0_0, %c0_1] : memref<1x2x16xf32, #tpu.memory_space<vmem>>, vector<1x2x16xf32>
    %1 = vector.shape_cast %0 : vector<1x2x16xf32> to vector<2x16xf32>
    %c0_2 = arith.constant 0 : index
    %c0_3 = arith.constant 0 : index
    %c0_4 = arith.constant 0 : index
    %2 = vector.load %arg2[%c0_2, %c0_3, %c0_4] : memref<9x8x2xf32, #tpu.memory_space<vmem>>, vector<9x8x2xf32>
    %c0_5 = arith.constant 0 : index
    %c0_6 = arith.constant 0 : index
    %3 = vector.load %arg3[%c0_5, %c0_6] : memref<8x1xf32, #tpu.memory_space<vmem>>, vector<8x1xf32>
    %cst = arith.constant 0.000000e+00 : f32
    %4 = vector.broadcast %cst : f32 to vector<2x5xf32>
    %5 = tpu.concatenate %4, %1, %4 in 1 : vector<2x5xf32>, vector<2x16xf32>, vector<2x5xf32> -> vector<2x26xf32>
    %6 = tpu.iota {dimensions = array<i32: 1>} : vector<1x16xi32>
    %c3_i32 = arith.constant 3 : i32
    %7 = vector.broadcast %c3_i32 : i32 to vector<1x16xi32>
    %8 = arith.andi %6, %7 : vector<1x16xi32>
    %c0_i32 = arith.constant 0 : i32
    %9 = vector.broadcast %c0_i32 : i32 to vector<1x16xi32>
    %10 = arith.cmpi ne, %8, %9 : vector<1x16xi32>
    %cst_7 = arith.constant 1.000000e+00 : f32
    %11 = vector.broadcast %cst_7 : f32 to vector<1x16xf32>
    %cst_8 = arith.constant 0.000000e+00 : f32
    %12 = vector.broadcast %cst_8 : f32 to vector<1x16xf32>
    %13 = arith.select %10, %11, %12 : vector<1x16xi1>, vector<1x16xf32>
    %c3_i32_9 = arith.constant 3 : i32
    %14 = vector.broadcast %c3_i32_9 : i32 to vector<1x16xi32>
    %15 = arith.cmpi ne, %8, %14 : vector<1x16xi32>
    %cst_10 = arith.constant 1.000000e+00 : f32
    %16 = vector.broadcast %cst_10 : f32 to vector<1x16xf32>
    %cst_11 = arith.constant 0.000000e+00 : f32
    %17 = vector.broadcast %cst_11 : f32 to vector<1x16xf32>
    %18 = arith.select %15, %16, %17 : vector<1x16xi1>, vector<1x16xf32>
    %cst_12 = arith.constant 0.000000e+00 : f32
    %19 = vector.broadcast %cst_12 : f32 to vector<8x16xf32>
    %20 = vector.extract_strided_slice %5 {offsets = [0, 0], sizes = [2, 16], strides = [1, 1]} : vector<2x26xf32> to vector<2x16xf32>
    %21 = vector.broadcast %13 : vector<1x16xf32> to vector<2x16xf32>
    %22 = arith.mulf %20, %21 : vector<2x16xf32>
    %23 = vector.extract_strided_slice %2 {offsets = [0, 0, 0], sizes = [1, 8, 2], strides = [1, 1, 1]} : vector<9x8x2xf32> to vector<1x8x2xf32>
    %24 = vector.shape_cast %23 : vector<1x8x2xf32> to vector<8x2xf32>
    %cst_13 = arith.constant dense<0.000000e+00> : vector<8x16xf32>
    %25 = tpu.matmul %24, %22, %cst_13 {dimension_numbers = #tpu.dot_dimension_numbers<[1], [0], [0], [1], [0, 0, 1, 1], [], []>} : vector<8x2xf32>, vector<2x16xf32>, vector<8x16xf32> -> vector<8x16xf32>
    %26 = arith.addf %19, %25 : vector<8x16xf32>
    %27 = vector.extract_strided_slice %5 {offsets = [0, 1], sizes = [2, 16], strides = [1, 1]} : vector<2x26xf32> to vector<2x16xf32>
    %28 = vector.extract_strided_slice %2 {offsets = [1, 0, 0], sizes = [1, 8, 2], strides = [1, 1, 1]} : vector<9x8x2xf32> to vector<1x8x2xf32>
    %29 = vector.shape_cast %28 : vector<1x8x2xf32> to vector<8x2xf32>
    %cst_14 = arith.constant dense<0.000000e+00> : vector<8x16xf32>
    %30 = tpu.matmul %29, %27, %cst_14 {dimension_numbers = #tpu.dot_dimension_numbers<[1], [0], [0], [1], [0, 0, 1, 1], [], []>} : vector<8x2xf32>, vector<2x16xf32>, vector<8x16xf32> -> vector<8x16xf32>
    %31 = arith.addf %26, %30 : vector<8x16xf32>
    %32 = vector.extract_strided_slice %5 {offsets = [0, 2], sizes = [2, 16], strides = [1, 1]} : vector<2x26xf32> to vector<2x16xf32>
    %33 = vector.broadcast %18 : vector<1x16xf32> to vector<2x16xf32>
    %34 = arith.mulf %32, %33 : vector<2x16xf32>
    %35 = vector.extract_strided_slice %2 {offsets = [2, 0, 0], sizes = [1, 8, 2], strides = [1, 1, 1]} : vector<9x8x2xf32> to vector<1x8x2xf32>
    %36 = vector.shape_cast %35 : vector<1x8x2xf32> to vector<8x2xf32>
    %cst_15 = arith.constant dense<0.000000e+00> : vector<8x16xf32>
    %37 = tpu.matmul %36, %34, %cst_15 {dimension_numbers = #tpu.dot_dimension_numbers<[1], [0], [0], [1], [0, 0, 1, 1], [], []>} : vector<8x2xf32>, vector<2x16xf32>, vector<8x16xf32> -> vector<8x16xf32>
    %38 = arith.addf %31, %37 : vector<8x16xf32>
    %39 = vector.extract_strided_slice %5 {offsets = [0, 4], sizes = [2, 16], strides = [1, 1]} : vector<2x26xf32> to vector<2x16xf32>
    %40 = vector.broadcast %13 : vector<1x16xf32> to vector<2x16xf32>
    %41 = arith.mulf %39, %40 : vector<2x16xf32>
    %42 = vector.extract_strided_slice %2 {offsets = [3, 0, 0], sizes = [1, 8, 2], strides = [1, 1, 1]} : vector<9x8x2xf32> to vector<1x8x2xf32>
    %43 = vector.shape_cast %42 : vector<1x8x2xf32> to vector<8x2xf32>
    %cst_16 = arith.constant dense<0.000000e+00> : vector<8x16xf32>
    %44 = tpu.matmul %43, %41, %cst_16 {dimension_numbers = #tpu.dot_dimension_numbers<[1], [0], [0], [1], [0, 0, 1, 1], [], []>} : vector<8x2xf32>, vector<2x16xf32>, vector<8x16xf32> -> vector<8x16xf32>
    %45 = arith.addf %38, %44 : vector<8x16xf32>
    %46 = vector.extract_strided_slice %5 {offsets = [0, 5], sizes = [2, 16], strides = [1, 1]} : vector<2x26xf32> to vector<2x16xf32>
    %47 = vector.extract_strided_slice %2 {offsets = [4, 0, 0], sizes = [1, 8, 2], strides = [1, 1, 1]} : vector<9x8x2xf32> to vector<1x8x2xf32>
    %48 = vector.shape_cast %47 : vector<1x8x2xf32> to vector<8x2xf32>
    %cst_17 = arith.constant dense<0.000000e+00> : vector<8x16xf32>
    %49 = tpu.matmul %48, %46, %cst_17 {dimension_numbers = #tpu.dot_dimension_numbers<[1], [0], [0], [1], [0, 0, 1, 1], [], []>} : vector<8x2xf32>, vector<2x16xf32>, vector<8x16xf32> -> vector<8x16xf32>
    %50 = arith.addf %45, %49 : vector<8x16xf32>
    %51 = vector.extract_strided_slice %5 {offsets = [0, 6], sizes = [2, 16], strides = [1, 1]} : vector<2x26xf32> to vector<2x16xf32>
    %52 = vector.broadcast %18 : vector<1x16xf32> to vector<2x16xf32>
    %53 = arith.mulf %51, %52 : vector<2x16xf32>
    %54 = vector.extract_strided_slice %2 {offsets = [5, 0, 0], sizes = [1, 8, 2], strides = [1, 1, 1]} : vector<9x8x2xf32> to vector<1x8x2xf32>
    %55 = vector.shape_cast %54 : vector<1x8x2xf32> to vector<8x2xf32>
    %cst_18 = arith.constant dense<0.000000e+00> : vector<8x16xf32>
    %56 = tpu.matmul %55, %53, %cst_18 {dimension_numbers = #tpu.dot_dimension_numbers<[1], [0], [0], [1], [0, 0, 1, 1], [], []>} : vector<8x2xf32>, vector<2x16xf32>, vector<8x16xf32> -> vector<8x16xf32>
    %57 = arith.addf %50, %56 : vector<8x16xf32>
    %58 = vector.extract_strided_slice %5 {offsets = [0, 8], sizes = [2, 16], strides = [1, 1]} : vector<2x26xf32> to vector<2x16xf32>
    %59 = vector.broadcast %13 : vector<1x16xf32> to vector<2x16xf32>
    %60 = arith.mulf %58, %59 : vector<2x16xf32>
    %61 = vector.extract_strided_slice %2 {offsets = [6, 0, 0], sizes = [1, 8, 2], strides = [1, 1, 1]} : vector<9x8x2xf32> to vector<1x8x2xf32>
    %62 = vector.shape_cast %61 : vector<1x8x2xf32> to vector<8x2xf32>
    %cst_19 = arith.constant dense<0.000000e+00> : vector<8x16xf32>
    %63 = tpu.matmul %62, %60, %cst_19 {dimension_numbers = #tpu.dot_dimension_numbers<[1], [0], [0], [1], [0, 0, 1, 1], [], []>} : vector<8x2xf32>, vector<2x16xf32>, vector<8x16xf32> -> vector<8x16xf32>
    %64 = arith.addf %57, %63 : vector<8x16xf32>
    %65 = vector.extract_strided_slice %5 {offsets = [0, 9], sizes = [2, 16], strides = [1, 1]} : vector<2x26xf32> to vector<2x16xf32>
    %66 = vector.extract_strided_slice %2 {offsets = [7, 0, 0], sizes = [1, 8, 2], strides = [1, 1, 1]} : vector<9x8x2xf32> to vector<1x8x2xf32>
    %67 = vector.shape_cast %66 : vector<1x8x2xf32> to vector<8x2xf32>
    %cst_20 = arith.constant dense<0.000000e+00> : vector<8x16xf32>
    %68 = tpu.matmul %67, %65, %cst_20 {dimension_numbers = #tpu.dot_dimension_numbers<[1], [0], [0], [1], [0, 0, 1, 1], [], []>} : vector<8x2xf32>, vector<2x16xf32>, vector<8x16xf32> -> vector<8x16xf32>
    %69 = arith.addf %64, %68 : vector<8x16xf32>
    %70 = vector.extract_strided_slice %5 {offsets = [0, 10], sizes = [2, 16], strides = [1, 1]} : vector<2x26xf32> to vector<2x16xf32>
    %71 = vector.broadcast %18 : vector<1x16xf32> to vector<2x16xf32>
    %72 = arith.mulf %70, %71 : vector<2x16xf32>
    %73 = vector.extract_strided_slice %2 {offsets = [8, 0, 0], sizes = [1, 8, 2], strides = [1, 1, 1]} : vector<9x8x2xf32> to vector<1x8x2xf32>
    %74 = vector.shape_cast %73 : vector<1x8x2xf32> to vector<8x2xf32>
    %cst_21 = arith.constant dense<0.000000e+00> : vector<8x16xf32>
    %75 = tpu.matmul %74, %72, %cst_21 {dimension_numbers = #tpu.dot_dimension_numbers<[1], [0], [0], [1], [0, 0, 1, 1], [], []>} : vector<8x2xf32>, vector<2x16xf32>, vector<8x16xf32> -> vector<8x16xf32>
    %76 = arith.addf %69, %75 : vector<8x16xf32>
    %77 = vector.broadcast %3 : vector<8x1xf32> to vector<8x16xf32>
    %78 = arith.addf %76, %77 : vector<8x16xf32>
    %cst_22 = arith.constant 2.000000e-01 : f32
    %79 = vector.broadcast %cst_22 : f32 to vector<8x16xf32>
    %80 = arith.mulf %79, %78 : vector<8x16xf32>
    %81 = arith.maximumf %78, %80 : vector<8x16xf32>
    %c0_23 = arith.constant 0 : index
    %c0_24 = arith.constant 0 : index
    %c0_25 = arith.constant 0 : index
    %82 = vector.load %arg4[%c0_23, %c0_24, %c0_25] : memref<9x8x8xf32, #tpu.memory_space<vmem>>, vector<9x8x8xf32>
    %c0_26 = arith.constant 0 : index
    %c0_27 = arith.constant 0 : index
    %83 = vector.load %arg5[%c0_26, %c0_27] : memref<8x1xf32, #tpu.memory_space<vmem>>, vector<8x1xf32>
    %cst_28 = arith.constant 0.000000e+00 : f32
    %84 = vector.broadcast %cst_28 : f32 to vector<8x5xf32>
    %85 = tpu.concatenate %84, %81, %84 in 1 : vector<8x5xf32>, vector<8x16xf32>, vector<8x5xf32> -> vector<8x26xf32>
    %86 = tpu.iota {dimensions = array<i32: 1>} : vector<1x16xi32>
    %c3_i32_29 = arith.constant 3 : i32
    %87 = vector.broadcast %c3_i32_29 : i32 to vector<1x16xi32>
    %88 = arith.andi %86, %87 : vector<1x16xi32>
    %c0_i32_30 = arith.constant 0 : i32
    %89 = vector.broadcast %c0_i32_30 : i32 to vector<1x16xi32>
    %90 = arith.cmpi ne, %88, %89 : vector<1x16xi32>
    %cst_31 = arith.constant 1.000000e+00 : f32
    %91 = vector.broadcast %cst_31 : f32 to vector<1x16xf32>
    %cst_32 = arith.constant 0.000000e+00 : f32
    %92 = vector.broadcast %cst_32 : f32 to vector<1x16xf32>
    %93 = arith.select %90, %91, %92 : vector<1x16xi1>, vector<1x16xf32>
    %c3_i32_33 = arith.constant 3 : i32
    %94 = vector.broadcast %c3_i32_33 : i32 to vector<1x16xi32>
    %95 = arith.cmpi ne, %88, %94 : vector<1x16xi32>
    %cst_34 = arith.constant 1.000000e+00 : f32
    %96 = vector.broadcast %cst_34 : f32 to vector<1x16xf32>
    %cst_35 = arith.constant 0.000000e+00 : f32
    %97 = vector.broadcast %cst_35 : f32 to vector<1x16xf32>
    %98 = arith.select %95, %96, %97 : vector<1x16xi1>, vector<1x16xf32>
    %cst_36 = arith.constant 0.000000e+00 : f32
    %99 = vector.broadcast %cst_36 : f32 to vector<8x16xf32>
    %100 = vector.extract_strided_slice %85 {offsets = [0, 0], sizes = [8, 16], strides = [1, 1]} : vector<8x26xf32> to vector<8x16xf32>
    %101 = vector.broadcast %93 : vector<1x16xf32> to vector<8x16xf32>
    %102 = arith.mulf %100, %101 : vector<8x16xf32>
    %103 = vector.extract_strided_slice %82 {offsets = [0, 0, 0], sizes = [1, 8, 8], strides = [1, 1, 1]} : vector<9x8x8xf32> to vector<1x8x8xf32>
    %104 = vector.shape_cast %103 : vector<1x8x8xf32> to vector<8x8xf32>
    %cst_37 = arith.constant dense<0.000000e+00> : vector<8x16xf32>
    %105 = tpu.matmul %104, %102, %cst_37 {dimension_numbers = #tpu.dot_dimension_numbers<[1], [0], [0], [1], [0, 0, 1, 1], [], []>} : vector<8x8xf32>, vector<8x16xf32>, vector<8x16xf32> -> vector<8x16xf32>
    %106 = arith.addf %99, %105 : vector<8x16xf32>
    %107 = vector.extract_strided_slice %85 {offsets = [0, 1], sizes = [8, 16], strides = [1, 1]} : vector<8x26xf32> to vector<8x16xf32>
    %108 = vector.extract_strided_slice %82 {offsets = [1, 0, 0], sizes = [1, 8, 8], strides = [1, 1, 1]} : vector<9x8x8xf32> to vector<1x8x8xf32>
    %109 = vector.shape_cast %108 : vector<1x8x8xf32> to vector<8x8xf32>
    %cst_38 = arith.constant dense<0.000000e+00> : vector<8x16xf32>
    %110 = tpu.matmul %109, %107, %cst_38 {dimension_numbers = #tpu.dot_dimension_numbers<[1], [0], [0], [1], [0, 0, 1, 1], [], []>} : vector<8x8xf32>, vector<8x16xf32>, vector<8x16xf32> -> vector<8x16xf32>
    %111 = arith.addf %106, %110 : vector<8x16xf32>
    %112 = vector.extract_strided_slice %85 {offsets = [0, 2], sizes = [8, 16], strides = [1, 1]} : vector<8x26xf32> to vector<8x16xf32>
    %113 = vector.broadcast %98 : vector<1x16xf32> to vector<8x16xf32>
    %114 = arith.mulf %112, %113 : vector<8x16xf32>
    %115 = vector.extract_strided_slice %82 {offsets = [2, 0, 0], sizes = [1, 8, 8], strides = [1, 1, 1]} : vector<9x8x8xf32> to vector<1x8x8xf32>
    %116 = vector.shape_cast %115 : vector<1x8x8xf32> to vector<8x8xf32>
    %cst_39 = arith.constant dense<0.000000e+00> : vector<8x16xf32>
    %117 = tpu.matmul %116, %114, %cst_39 {dimension_numbers = #tpu.dot_dimension_numbers<[1], [0], [0], [1], [0, 0, 1, 1], [], []>} : vector<8x8xf32>, vector<8x16xf32>, vector<8x16xf32> -> vector<8x16xf32>
    %118 = arith.addf %111, %117 : vector<8x16xf32>
    %119 = vector.extract_strided_slice %85 {offsets = [0, 4], sizes = [8, 16], strides = [1, 1]} : vector<8x26xf32> to vector<8x16xf32>
    %120 = vector.broadcast %93 : vector<1x16xf32> to vector<8x16xf32>
    %121 = arith.mulf %119, %120 : vector<8x16xf32>
    %122 = vector.extract_strided_slice %82 {offsets = [3, 0, 0], sizes = [1, 8, 8], strides = [1, 1, 1]} : vector<9x8x8xf32> to vector<1x8x8xf32>
    %123 = vector.shape_cast %122 : vector<1x8x8xf32> to vector<8x8xf32>
    %cst_40 = arith.constant dense<0.000000e+00> : vector<8x16xf32>
    %124 = tpu.matmul %123, %121, %cst_40 {dimension_numbers = #tpu.dot_dimension_numbers<[1], [0], [0], [1], [0, 0, 1, 1], [], []>} : vector<8x8xf32>, vector<8x16xf32>, vector<8x16xf32> -> vector<8x16xf32>
    %125 = arith.addf %118, %124 : vector<8x16xf32>
    %126 = vector.extract_strided_slice %85 {offsets = [0, 5], sizes = [8, 16], strides = [1, 1]} : vector<8x26xf32> to vector<8x16xf32>
    %127 = vector.extract_strided_slice %82 {offsets = [4, 0, 0], sizes = [1, 8, 8], strides = [1, 1, 1]} : vector<9x8x8xf32> to vector<1x8x8xf32>
    %128 = vector.shape_cast %127 : vector<1x8x8xf32> to vector<8x8xf32>
    %cst_41 = arith.constant dense<0.000000e+00> : vector<8x16xf32>
    %129 = tpu.matmul %128, %126, %cst_41 {dimension_numbers = #tpu.dot_dimension_numbers<[1], [0], [0], [1], [0, 0, 1, 1], [], []>} : vector<8x8xf32>, vector<8x16xf32>, vector<8x16xf32> -> vector<8x16xf32>
    %130 = arith.addf %125, %129 : vector<8x16xf32>
    %131 = vector.extract_strided_slice %85 {offsets = [0, 6], sizes = [8, 16], strides = [1, 1]} : vector<8x26xf32> to vector<8x16xf32>
    %132 = vector.broadcast %98 : vector<1x16xf32> to vector<8x16xf32>
    %133 = arith.mulf %131, %132 : vector<8x16xf32>
    %134 = vector.extract_strided_slice %82 {offsets = [5, 0, 0], sizes = [1, 8, 8], strides = [1, 1, 1]} : vector<9x8x8xf32> to vector<1x8x8xf32>
    %135 = vector.shape_cast %134 : vector<1x8x8xf32> to vector<8x8xf32>
    %cst_42 = arith.constant dense<0.000000e+00> : vector<8x16xf32>
    %136 = tpu.matmul %135, %133, %cst_42 {dimension_numbers = #tpu.dot_dimension_numbers<[1], [0], [0], [1], [0, 0, 1, 1], [], []>} : vector<8x8xf32>, vector<8x16xf32>, vector<8x16xf32> -> vector<8x16xf32>
    %137 = arith.addf %130, %136 : vector<8x16xf32>
    %138 = vector.extract_strided_slice %85 {offsets = [0, 8], sizes = [8, 16], strides = [1, 1]} : vector<8x26xf32> to vector<8x16xf32>
    %139 = vector.broadcast %93 : vector<1x16xf32> to vector<8x16xf32>
    %140 = arith.mulf %138, %139 : vector<8x16xf32>
    %141 = vector.extract_strided_slice %82 {offsets = [6, 0, 0], sizes = [1, 8, 8], strides = [1, 1, 1]} : vector<9x8x8xf32> to vector<1x8x8xf32>
    %142 = vector.shape_cast %141 : vector<1x8x8xf32> to vector<8x8xf32>
    %cst_43 = arith.constant dense<0.000000e+00> : vector<8x16xf32>
    %143 = tpu.matmul %142, %140, %cst_43 {dimension_numbers = #tpu.dot_dimension_numbers<[1], [0], [0], [1], [0, 0, 1, 1], [], []>} : vector<8x8xf32>, vector<8x16xf32>, vector<8x16xf32> -> vector<8x16xf32>
    %144 = arith.addf %137, %143 : vector<8x16xf32>
    %145 = vector.extract_strided_slice %85 {offsets = [0, 9], sizes = [8, 16], strides = [1, 1]} : vector<8x26xf32> to vector<8x16xf32>
    %146 = vector.extract_strided_slice %82 {offsets = [7, 0, 0], sizes = [1, 8, 8], strides = [1, 1, 1]} : vector<9x8x8xf32> to vector<1x8x8xf32>
    %147 = vector.shape_cast %146 : vector<1x8x8xf32> to vector<8x8xf32>
    %cst_44 = arith.constant dense<0.000000e+00> : vector<8x16xf32>
    %148 = tpu.matmul %147, %145, %cst_44 {dimension_numbers = #tpu.dot_dimension_numbers<[1], [0], [0], [1], [0, 0, 1, 1], [], []>} : vector<8x8xf32>, vector<8x16xf32>, vector<8x16xf32> -> vector<8x16xf32>
    %149 = arith.addf %144, %148 : vector<8x16xf32>
    %150 = vector.extract_strided_slice %85 {offsets = [0, 10], sizes = [8, 16], strides = [1, 1]} : vector<8x26xf32> to vector<8x16xf32>
    %151 = vector.broadcast %98 : vector<1x16xf32> to vector<8x16xf32>
    %152 = arith.mulf %150, %151 : vector<8x16xf32>
    %153 = vector.extract_strided_slice %82 {offsets = [8, 0, 0], sizes = [1, 8, 8], strides = [1, 1, 1]} : vector<9x8x8xf32> to vector<1x8x8xf32>
    %154 = vector.shape_cast %153 : vector<1x8x8xf32> to vector<8x8xf32>
    %cst_45 = arith.constant dense<0.000000e+00> : vector<8x16xf32>
    %155 = tpu.matmul %154, %152, %cst_45 {dimension_numbers = #tpu.dot_dimension_numbers<[1], [0], [0], [1], [0, 0, 1, 1], [], []>} : vector<8x8xf32>, vector<8x16xf32>, vector<8x16xf32> -> vector<8x16xf32>
    %156 = arith.addf %149, %155 : vector<8x16xf32>
    %157 = vector.broadcast %83 : vector<8x1xf32> to vector<8x16xf32>
    %158 = arith.addf %156, %157 : vector<8x16xf32>
    %cst_46 = arith.constant 2.000000e-01 : f32
    %159 = vector.broadcast %cst_46 : f32 to vector<8x16xf32>
    %160 = arith.mulf %159, %158 : vector<8x16xf32>
    %161 = arith.maximumf %158, %160 : vector<8x16xf32>
    %162 = tpu.iota {dimensions = array<i32: 0>} : vector<16x64xi32>
    %163 = tpu.iota {dimensions = array<i32: 1>} : vector<16x64xi32>
    %c3_i32_47 = arith.constant 3 : i32
    %164 = vector.broadcast %c3_i32_47 : i32 to vector<16x64xi32>
    %165 = arith.shrsi %163, %164 : vector<16x64xi32>
    %c7_i32 = arith.constant 7 : i32
    %166 = vector.broadcast %c7_i32 : i32 to vector<16x64xi32>
    %167 = arith.andi %163, %166 : vector<16x64xi32>
    %c1_i32 = arith.constant 1 : i32
    %168 = vector.broadcast %c1_i32 : i32 to vector<16x64xi32>
    %169 = arith.shrsi %165, %168 : vector<16x64xi32>
    %c2_i32 = arith.constant 2 : i32
    %170 = vector.broadcast %c2_i32 : i32 to vector<16x64xi32>
    %171 = arith.shli %169, %170 : vector<16x64xi32>
    %c1_i32_48 = arith.constant 1 : i32
    %172 = vector.broadcast %c1_i32_48 : i32 to vector<16x64xi32>
    %173 = arith.shrsi %167, %172 : vector<16x64xi32>
    %174 = arith.addi %171, %173 : vector<16x64xi32>
    %175 = arith.cmpi eq, %162, %174 : vector<16x64xi32>
    %cst_49 = arith.constant 1.000000e+00 : f32
    %176 = vector.broadcast %cst_49 : f32 to vector<16x64xf32>
    %cst_50 = arith.constant 0.000000e+00 : f32
    %177 = vector.broadcast %cst_50 : f32 to vector<16x64xf32>
    %178 = arith.select %175, %176, %177 : vector<16x64xi1>, vector<16x64xf32>
    %cst_51 = arith.constant dense<0.000000e+00> : vector<8x64xf32>
    %179 = tpu.matmul %161, %178, %cst_51 {dimension_numbers = #tpu.dot_dimension_numbers<[1], [0], [0], [1], [0, 0, 1, 1], [], []>} : vector<8x16xf32>, vector<16x64xf32>, vector<8x64xf32> -> vector<8x64xf32>
    %c0_52 = arith.constant 0 : index
    %c0_53 = arith.constant 0 : index
    %c0_54 = arith.constant 0 : index
    %180 = vector.load %arg6[%c0_52, %c0_53, %c0_54] : memref<9x16x8xf32, #tpu.memory_space<vmem>>, vector<9x16x8xf32>
    %c0_55 = arith.constant 0 : index
    %c0_56 = arith.constant 0 : index
    %181 = vector.load %arg7[%c0_55, %c0_56] : memref<16x1xf32, #tpu.memory_space<vmem>>, vector<16x1xf32>
    %cst_57 = arith.constant 0.000000e+00 : f32
    %182 = vector.broadcast %cst_57 : f32 to vector<8x9xf32>
    %183 = tpu.concatenate %182, %179, %182 in 1 : vector<8x9xf32>, vector<8x64xf32>, vector<8x9xf32> -> vector<8x82xf32>
    %184 = tpu.iota {dimensions = array<i32: 1>} : vector<1x64xi32>
    %c7_i32_58 = arith.constant 7 : i32
    %185 = vector.broadcast %c7_i32_58 : i32 to vector<1x64xi32>
    %186 = arith.andi %184, %185 : vector<1x64xi32>
    %c0_i32_59 = arith.constant 0 : i32
    %187 = vector.broadcast %c0_i32_59 : i32 to vector<1x64xi32>
    %188 = arith.cmpi ne, %186, %187 : vector<1x64xi32>
    %cst_60 = arith.constant 1.000000e+00 : f32
    %189 = vector.broadcast %cst_60 : f32 to vector<1x64xf32>
    %cst_61 = arith.constant 0.000000e+00 : f32
    %190 = vector.broadcast %cst_61 : f32 to vector<1x64xf32>
    %191 = arith.select %188, %189, %190 : vector<1x64xi1>, vector<1x64xf32>
    %c7_i32_62 = arith.constant 7 : i32
    %192 = vector.broadcast %c7_i32_62 : i32 to vector<1x64xi32>
    %193 = arith.cmpi ne, %186, %192 : vector<1x64xi32>
    %cst_63 = arith.constant 1.000000e+00 : f32
    %194 = vector.broadcast %cst_63 : f32 to vector<1x64xf32>
    %cst_64 = arith.constant 0.000000e+00 : f32
    %195 = vector.broadcast %cst_64 : f32 to vector<1x64xf32>
    %196 = arith.select %193, %194, %195 : vector<1x64xi1>, vector<1x64xf32>
    %cst_65 = arith.constant 0.000000e+00 : f32
    %197 = vector.broadcast %cst_65 : f32 to vector<16x64xf32>
    %198 = vector.extract_strided_slice %183 {offsets = [0, 0], sizes = [8, 64], strides = [1, 1]} : vector<8x82xf32> to vector<8x64xf32>
    %199 = vector.broadcast %191 : vector<1x64xf32> to vector<8x64xf32>
    %200 = arith.mulf %198, %199 : vector<8x64xf32>
    %201 = vector.extract_strided_slice %180 {offsets = [0, 0, 0], sizes = [1, 16, 8], strides = [1, 1, 1]} : vector<9x16x8xf32> to vector<1x16x8xf32>
    %202 = vector.shape_cast %201 : vector<1x16x8xf32> to vector<16x8xf32>
    %cst_66 = arith.constant dense<0.000000e+00> : vector<16x64xf32>
    %203 = tpu.matmul %202, %200, %cst_66 {dimension_numbers = #tpu.dot_dimension_numbers<[1], [0], [0], [1], [0, 0, 1, 1], [], []>} : vector<16x8xf32>, vector<8x64xf32>, vector<16x64xf32> -> vector<16x64xf32>
    %204 = arith.addf %197, %203 : vector<16x64xf32>
    %205 = vector.extract_strided_slice %183 {offsets = [0, 1], sizes = [8, 64], strides = [1, 1]} : vector<8x82xf32> to vector<8x64xf32>
    %206 = vector.extract_strided_slice %180 {offsets = [1, 0, 0], sizes = [1, 16, 8], strides = [1, 1, 1]} : vector<9x16x8xf32> to vector<1x16x8xf32>
    %207 = vector.shape_cast %206 : vector<1x16x8xf32> to vector<16x8xf32>
    %cst_67 = arith.constant dense<0.000000e+00> : vector<16x64xf32>
    %208 = tpu.matmul %207, %205, %cst_67 {dimension_numbers = #tpu.dot_dimension_numbers<[1], [0], [0], [1], [0, 0, 1, 1], [], []>} : vector<16x8xf32>, vector<8x64xf32>, vector<16x64xf32> -> vector<16x64xf32>
    %209 = arith.addf %204, %208 : vector<16x64xf32>
    %210 = vector.extract_strided_slice %183 {offsets = [0, 2], sizes = [8, 64], strides = [1, 1]} : vector<8x82xf32> to vector<8x64xf32>
    %211 = vector.broadcast %196 : vector<1x64xf32> to vector<8x64xf32>
    %212 = arith.mulf %210, %211 : vector<8x64xf32>
    %213 = vector.extract_strided_slice %180 {offsets = [2, 0, 0], sizes = [1, 16, 8], strides = [1, 1, 1]} : vector<9x16x8xf32> to vector<1x16x8xf32>
    %214 = vector.shape_cast %213 : vector<1x16x8xf32> to vector<16x8xf32>
    %cst_68 = arith.constant dense<0.000000e+00> : vector<16x64xf32>
    %215 = tpu.matmul %214, %212, %cst_68 {dimension_numbers = #tpu.dot_dimension_numbers<[1], [0], [0], [1], [0, 0, 1, 1], [], []>} : vector<16x8xf32>, vector<8x64xf32>, vector<16x64xf32> -> vector<16x64xf32>
    %216 = arith.addf %209, %215 : vector<16x64xf32>
    %217 = vector.extract_strided_slice %183 {offsets = [0, 8], sizes = [8, 64], strides = [1, 1]} : vector<8x82xf32> to vector<8x64xf32>
    %218 = vector.broadcast %191 : vector<1x64xf32> to vector<8x64xf32>
    %219 = arith.mulf %217, %218 : vector<8x64xf32>
    %220 = vector.extract_strided_slice %180 {offsets = [3, 0, 0], sizes = [1, 16, 8], strides = [1, 1, 1]} : vector<9x16x8xf32> to vector<1x16x8xf32>
    %221 = vector.shape_cast %220 : vector<1x16x8xf32> to vector<16x8xf32>
    %cst_69 = arith.constant dense<0.000000e+00> : vector<16x64xf32>
    %222 = tpu.matmul %221, %219, %cst_69 {dimension_numbers = #tpu.dot_dimension_numbers<[1], [0], [0], [1], [0, 0, 1, 1], [], []>} : vector<16x8xf32>, vector<8x64xf32>, vector<16x64xf32> -> vector<16x64xf32>
    %223 = arith.addf %216, %222 : vector<16x64xf32>
    %224 = vector.extract_strided_slice %183 {offsets = [0, 9], sizes = [8, 64], strides = [1, 1]} : vector<8x82xf32> to vector<8x64xf32>
    %225 = vector.extract_strided_slice %180 {offsets = [4, 0, 0], sizes = [1, 16, 8], strides = [1, 1, 1]} : vector<9x16x8xf32> to vector<1x16x8xf32>
    %226 = vector.shape_cast %225 : vector<1x16x8xf32> to vector<16x8xf32>
    %cst_70 = arith.constant dense<0.000000e+00> : vector<16x64xf32>
    %227 = tpu.matmul %226, %224, %cst_70 {dimension_numbers = #tpu.dot_dimension_numbers<[1], [0], [0], [1], [0, 0, 1, 1], [], []>} : vector<16x8xf32>, vector<8x64xf32>, vector<16x64xf32> -> vector<16x64xf32>
    %228 = arith.addf %223, %227 : vector<16x64xf32>
    %229 = vector.extract_strided_slice %183 {offsets = [0, 10], sizes = [8, 64], strides = [1, 1]} : vector<8x82xf32> to vector<8x64xf32>
    %230 = vector.broadcast %196 : vector<1x64xf32> to vector<8x64xf32>
    %231 = arith.mulf %229, %230 : vector<8x64xf32>
    %232 = vector.extract_strided_slice %180 {offsets = [5, 0, 0], sizes = [1, 16, 8], strides = [1, 1, 1]} : vector<9x16x8xf32> to vector<1x16x8xf32>
    %233 = vector.shape_cast %232 : vector<1x16x8xf32> to vector<16x8xf32>
    %cst_71 = arith.constant dense<0.000000e+00> : vector<16x64xf32>
    %234 = tpu.matmul %233, %231, %cst_71 {dimension_numbers = #tpu.dot_dimension_numbers<[1], [0], [0], [1], [0, 0, 1, 1], [], []>} : vector<16x8xf32>, vector<8x64xf32>, vector<16x64xf32> -> vector<16x64xf32>
    %235 = arith.addf %228, %234 : vector<16x64xf32>
    %236 = vector.extract_strided_slice %183 {offsets = [0, 16], sizes = [8, 64], strides = [1, 1]} : vector<8x82xf32> to vector<8x64xf32>
    %237 = vector.broadcast %191 : vector<1x64xf32> to vector<8x64xf32>
    %238 = arith.mulf %236, %237 : vector<8x64xf32>
    %239 = vector.extract_strided_slice %180 {offsets = [6, 0, 0], sizes = [1, 16, 8], strides = [1, 1, 1]} : vector<9x16x8xf32> to vector<1x16x8xf32>
    %240 = vector.shape_cast %239 : vector<1x16x8xf32> to vector<16x8xf32>
    %cst_72 = arith.constant dense<0.000000e+00> : vector<16x64xf32>
    %241 = tpu.matmul %240, %238, %cst_72 {dimension_numbers = #tpu.dot_dimension_numbers<[1], [0], [0], [1], [0, 0, 1, 1], [], []>} : vector<16x8xf32>, vector<8x64xf32>, vector<16x64xf32> -> vector<16x64xf32>
    %242 = arith.addf %235, %241 : vector<16x64xf32>
    %243 = vector.extract_strided_slice %183 {offsets = [0, 17], sizes = [8, 64], strides = [1, 1]} : vector<8x82xf32> to vector<8x64xf32>
    %244 = vector.extract_strided_slice %180 {offsets = [7, 0, 0], sizes = [1, 16, 8], strides = [1, 1, 1]} : vector<9x16x8xf32> to vector<1x16x8xf32>
    %245 = vector.shape_cast %244 : vector<1x16x8xf32> to vector<16x8xf32>
    %cst_73 = arith.constant dense<0.000000e+00> : vector<16x64xf32>
    %246 = tpu.matmul %245, %243, %cst_73 {dimension_numbers = #tpu.dot_dimension_numbers<[1], [0], [0], [1], [0, 0, 1, 1], [], []>} : vector<16x8xf32>, vector<8x64xf32>, vector<16x64xf32> -> vector<16x64xf32>
    %247 = arith.addf %242, %246 : vector<16x64xf32>
    %248 = vector.extract_strided_slice %183 {offsets = [0, 18], sizes = [8, 64], strides = [1, 1]} : vector<8x82xf32> to vector<8x64xf32>
    %249 = vector.broadcast %196 : vector<1x64xf32> to vector<8x64xf32>
    %250 = arith.mulf %248, %249 : vector<8x64xf32>
    %251 = vector.extract_strided_slice %180 {offsets = [8, 0, 0], sizes = [1, 16, 8], strides = [1, 1, 1]} : vector<9x16x8xf32> to vector<1x16x8xf32>
    %252 = vector.shape_cast %251 : vector<1x16x8xf32> to vector<16x8xf32>
    %cst_74 = arith.constant dense<0.000000e+00> : vector<16x64xf32>
    %253 = tpu.matmul %252, %250, %cst_74 {dimension_numbers = #tpu.dot_dimension_numbers<[1], [0], [0], [1], [0, 0, 1, 1], [], []>} : vector<16x8xf32>, vector<8x64xf32>, vector<16x64xf32> -> vector<16x64xf32>
    %254 = arith.addf %247, %253 : vector<16x64xf32>
    %255 = vector.broadcast %181 : vector<16x1xf32> to vector<16x64xf32>
    %256 = arith.addf %254, %255 : vector<16x64xf32>
    %cst_75 = arith.constant 2.000000e-01 : f32
    %257 = vector.broadcast %cst_75 : f32 to vector<16x64xf32>
    %258 = arith.mulf %257, %256 : vector<16x64xf32>
    %259 = arith.maximumf %256, %258 : vector<16x64xf32>
    %c0_76 = arith.constant 0 : index
    %c0_77 = arith.constant 0 : index
    %c0_78 = arith.constant 0 : index
    %260 = vector.load %arg8[%c0_76, %c0_77, %c0_78] : memref<9x16x16xf32, #tpu.memory_space<vmem>>, vector<9x16x16xf32>
    %c0_79 = arith.constant 0 : index
    %c0_80 = arith.constant 0 : index
    %261 = vector.load %arg9[%c0_79, %c0_80] : memref<16x1xf32, #tpu.memory_space<vmem>>, vector<16x1xf32>
    %cst_81 = arith.constant 0.000000e+00 : f32
    %262 = vector.broadcast %cst_81 : f32 to vector<16x9xf32>
    %263 = tpu.concatenate %262, %259, %262 in 1 : vector<16x9xf32>, vector<16x64xf32>, vector<16x9xf32> -> vector<16x82xf32>
    %264 = tpu.iota {dimensions = array<i32: 1>} : vector<1x64xi32>
    %c7_i32_82 = arith.constant 7 : i32
    %265 = vector.broadcast %c7_i32_82 : i32 to vector<1x64xi32>
    %266 = arith.andi %264, %265 : vector<1x64xi32>
    %c0_i32_83 = arith.constant 0 : i32
    %267 = vector.broadcast %c0_i32_83 : i32 to vector<1x64xi32>
    %268 = arith.cmpi ne, %266, %267 : vector<1x64xi32>
    %cst_84 = arith.constant 1.000000e+00 : f32
    %269 = vector.broadcast %cst_84 : f32 to vector<1x64xf32>
    %cst_85 = arith.constant 0.000000e+00 : f32
    %270 = vector.broadcast %cst_85 : f32 to vector<1x64xf32>
    %271 = arith.select %268, %269, %270 : vector<1x64xi1>, vector<1x64xf32>
    %c7_i32_86 = arith.constant 7 : i32
    %272 = vector.broadcast %c7_i32_86 : i32 to vector<1x64xi32>
    %273 = arith.cmpi ne, %266, %272 : vector<1x64xi32>
    %cst_87 = arith.constant 1.000000e+00 : f32
    %274 = vector.broadcast %cst_87 : f32 to vector<1x64xf32>
    %cst_88 = arith.constant 0.000000e+00 : f32
    %275 = vector.broadcast %cst_88 : f32 to vector<1x64xf32>
    %276 = arith.select %273, %274, %275 : vector<1x64xi1>, vector<1x64xf32>
    %cst_89 = arith.constant 0.000000e+00 : f32
    %277 = vector.broadcast %cst_89 : f32 to vector<16x64xf32>
    %278 = vector.extract_strided_slice %263 {offsets = [0, 0], sizes = [16, 64], strides = [1, 1]} : vector<16x82xf32> to vector<16x64xf32>
    %279 = vector.broadcast %271 : vector<1x64xf32> to vector<16x64xf32>
    %280 = arith.mulf %278, %279 : vector<16x64xf32>
    %281 = vector.extract_strided_slice %260 {offsets = [0, 0, 0], sizes = [1, 16, 16], strides = [1, 1, 1]} : vector<9x16x16xf32> to vector<1x16x16xf32>
    %282 = vector.shape_cast %281 : vector<1x16x16xf32> to vector<16x16xf32>
    %cst_90 = arith.constant dense<0.000000e+00> : vector<16x64xf32>
    %283 = tpu.matmul %282, %280, %cst_90 {dimension_numbers = #tpu.dot_dimension_numbers<[1], [0], [0], [1], [0, 0, 1, 1], [], []>} : vector<16x16xf32>, vector<16x64xf32>, vector<16x64xf32> -> vector<16x64xf32>
    %284 = arith.addf %277, %283 : vector<16x64xf32>
    %285 = vector.extract_strided_slice %263 {offsets = [0, 1], sizes = [16, 64], strides = [1, 1]} : vector<16x82xf32> to vector<16x64xf32>
    %286 = vector.extract_strided_slice %260 {offsets = [1, 0, 0], sizes = [1, 16, 16], strides = [1, 1, 1]} : vector<9x16x16xf32> to vector<1x16x16xf32>
    %287 = vector.shape_cast %286 : vector<1x16x16xf32> to vector<16x16xf32>
    %cst_91 = arith.constant dense<0.000000e+00> : vector<16x64xf32>
    %288 = tpu.matmul %287, %285, %cst_91 {dimension_numbers = #tpu.dot_dimension_numbers<[1], [0], [0], [1], [0, 0, 1, 1], [], []>} : vector<16x16xf32>, vector<16x64xf32>, vector<16x64xf32> -> vector<16x64xf32>
    %289 = arith.addf %284, %288 : vector<16x64xf32>
    %290 = vector.extract_strided_slice %263 {offsets = [0, 2], sizes = [16, 64], strides = [1, 1]} : vector<16x82xf32> to vector<16x64xf32>
    %291 = vector.broadcast %276 : vector<1x64xf32> to vector<16x64xf32>
    %292 = arith.mulf %290, %291 : vector<16x64xf32>
    %293 = vector.extract_strided_slice %260 {offsets = [2, 0, 0], sizes = [1, 16, 16], strides = [1, 1, 1]} : vector<9x16x16xf32> to vector<1x16x16xf32>
    %294 = vector.shape_cast %293 : vector<1x16x16xf32> to vector<16x16xf32>
    %cst_92 = arith.constant dense<0.000000e+00> : vector<16x64xf32>
    %295 = tpu.matmul %294, %292, %cst_92 {dimension_numbers = #tpu.dot_dimension_numbers<[1], [0], [0], [1], [0, 0, 1, 1], [], []>} : vector<16x16xf32>, vector<16x64xf32>, vector<16x64xf32> -> vector<16x64xf32>
    %296 = arith.addf %289, %295 : vector<16x64xf32>
    %297 = vector.extract_strided_slice %263 {offsets = [0, 8], sizes = [16, 64], strides = [1, 1]} : vector<16x82xf32> to vector<16x64xf32>
    %298 = vector.broadcast %271 : vector<1x64xf32> to vector<16x64xf32>
    %299 = arith.mulf %297, %298 : vector<16x64xf32>
    %300 = vector.extract_strided_slice %260 {offsets = [3, 0, 0], sizes = [1, 16, 16], strides = [1, 1, 1]} : vector<9x16x16xf32> to vector<1x16x16xf32>
    %301 = vector.shape_cast %300 : vector<1x16x16xf32> to vector<16x16xf32>
    %cst_93 = arith.constant dense<0.000000e+00> : vector<16x64xf32>
    %302 = tpu.matmul %301, %299, %cst_93 {dimension_numbers = #tpu.dot_dimension_numbers<[1], [0], [0], [1], [0, 0, 1, 1], [], []>} : vector<16x16xf32>, vector<16x64xf32>, vector<16x64xf32> -> vector<16x64xf32>
    %303 = arith.addf %296, %302 : vector<16x64xf32>
    %304 = vector.extract_strided_slice %263 {offsets = [0, 9], sizes = [16, 64], strides = [1, 1]} : vector<16x82xf32> to vector<16x64xf32>
    %305 = vector.extract_strided_slice %260 {offsets = [4, 0, 0], sizes = [1, 16, 16], strides = [1, 1, 1]} : vector<9x16x16xf32> to vector<1x16x16xf32>
    %306 = vector.shape_cast %305 : vector<1x16x16xf32> to vector<16x16xf32>
    %cst_94 = arith.constant dense<0.000000e+00> : vector<16x64xf32>
    %307 = tpu.matmul %306, %304, %cst_94 {dimension_numbers = #tpu.dot_dimension_numbers<[1], [0], [0], [1], [0, 0, 1, 1], [], []>} : vector<16x16xf32>, vector<16x64xf32>, vector<16x64xf32> -> vector<16x64xf32>
    %308 = arith.addf %303, %307 : vector<16x64xf32>
    %309 = vector.extract_strided_slice %263 {offsets = [0, 10], sizes = [16, 64], strides = [1, 1]} : vector<16x82xf32> to vector<16x64xf32>
    %310 = vector.broadcast %276 : vector<1x64xf32> to vector<16x64xf32>
    %311 = arith.mulf %309, %310 : vector<16x64xf32>
    %312 = vector.extract_strided_slice %260 {offsets = [5, 0, 0], sizes = [1, 16, 16], strides = [1, 1, 1]} : vector<9x16x16xf32> to vector<1x16x16xf32>
    %313 = vector.shape_cast %312 : vector<1x16x16xf32> to vector<16x16xf32>
    %cst_95 = arith.constant dense<0.000000e+00> : vector<16x64xf32>
    %314 = tpu.matmul %313, %311, %cst_95 {dimension_numbers = #tpu.dot_dimension_numbers<[1], [0], [0], [1], [0, 0, 1, 1], [], []>} : vector<16x16xf32>, vector<16x64xf32>, vector<16x64xf32> -> vector<16x64xf32>
    %315 = arith.addf %308, %314 : vector<16x64xf32>
    %316 = vector.extract_strided_slice %263 {offsets = [0, 16], sizes = [16, 64], strides = [1, 1]} : vector<16x82xf32> to vector<16x64xf32>
    %317 = vector.broadcast %271 : vector<1x64xf32> to vector<16x64xf32>
    %318 = arith.mulf %316, %317 : vector<16x64xf32>
    %319 = vector.extract_strided_slice %260 {offsets = [6, 0, 0], sizes = [1, 16, 16], strides = [1, 1, 1]} : vector<9x16x16xf32> to vector<1x16x16xf32>
    %320 = vector.shape_cast %319 : vector<1x16x16xf32> to vector<16x16xf32>
    %cst_96 = arith.constant dense<0.000000e+00> : vector<16x64xf32>
    %321 = tpu.matmul %320, %318, %cst_96 {dimension_numbers = #tpu.dot_dimension_numbers<[1], [0], [0], [1], [0, 0, 1, 1], [], []>} : vector<16x16xf32>, vector<16x64xf32>, vector<16x64xf32> -> vector<16x64xf32>
    %322 = arith.addf %315, %321 : vector<16x64xf32>
    %323 = vector.extract_strided_slice %263 {offsets = [0, 17], sizes = [16, 64], strides = [1, 1]} : vector<16x82xf32> to vector<16x64xf32>
    %324 = vector.extract_strided_slice %260 {offsets = [7, 0, 0], sizes = [1, 16, 16], strides = [1, 1, 1]} : vector<9x16x16xf32> to vector<1x16x16xf32>
    %325 = vector.shape_cast %324 : vector<1x16x16xf32> to vector<16x16xf32>
    %cst_97 = arith.constant dense<0.000000e+00> : vector<16x64xf32>
    %326 = tpu.matmul %325, %323, %cst_97 {dimension_numbers = #tpu.dot_dimension_numbers<[1], [0], [0], [1], [0, 0, 1, 1], [], []>} : vector<16x16xf32>, vector<16x64xf32>, vector<16x64xf32> -> vector<16x64xf32>
    %327 = arith.addf %322, %326 : vector<16x64xf32>
    %328 = vector.extract_strided_slice %263 {offsets = [0, 18], sizes = [16, 64], strides = [1, 1]} : vector<16x82xf32> to vector<16x64xf32>
    %329 = vector.broadcast %276 : vector<1x64xf32> to vector<16x64xf32>
    %330 = arith.mulf %328, %329 : vector<16x64xf32>
    %331 = vector.extract_strided_slice %260 {offsets = [8, 0, 0], sizes = [1, 16, 16], strides = [1, 1, 1]} : vector<9x16x16xf32> to vector<1x16x16xf32>
    %332 = vector.shape_cast %331 : vector<1x16x16xf32> to vector<16x16xf32>
    %cst_98 = arith.constant dense<0.000000e+00> : vector<16x64xf32>
    %333 = tpu.matmul %332, %330, %cst_98 {dimension_numbers = #tpu.dot_dimension_numbers<[1], [0], [0], [1], [0, 0, 1, 1], [], []>} : vector<16x16xf32>, vector<16x64xf32>, vector<16x64xf32> -> vector<16x64xf32>
    %334 = arith.addf %327, %333 : vector<16x64xf32>
    %335 = vector.broadcast %261 : vector<16x1xf32> to vector<16x64xf32>
    %336 = arith.addf %334, %335 : vector<16x64xf32>
    %cst_99 = arith.constant 2.000000e-01 : f32
    %337 = vector.broadcast %cst_99 : f32 to vector<16x64xf32>
    %338 = arith.mulf %337, %336 : vector<16x64xf32>
    %339 = arith.maximumf %336, %338 : vector<16x64xf32>
    %c0_100 = arith.constant 0 : index
    %c0_101 = arith.constant 0 : index
    %340 = vector.load %arg10[%c0_100, %c0_101] : memref<3x16xf32, #tpu.memory_space<vmem>>, vector<3x16xf32>
    %c0_102 = arith.constant 0 : index
    %c0_103 = arith.constant 0 : index
    %341 = vector.load %arg11[%c0_102, %c0_103] : memref<3x1xf32, #tpu.memory_space<vmem>>, vector<3x1xf32>
    %cst_104 = arith.constant dense<0.000000e+00> : vector<3x64xf32>
    %342 = tpu.matmul %340, %339, %cst_104 {dimension_numbers = #tpu.dot_dimension_numbers<[1], [0], [0], [1], [0, 0, 1, 1], [], []>} : vector<3x16xf32>, vector<16x64xf32>, vector<3x64xf32> -> vector<3x64xf32>
    %343 = vector.broadcast %341 : vector<3x1xf32> to vector<3x64xf32>
    %344 = arith.addf %342, %343 : vector<3x64xf32>
    %345 = math.tanh %344 : vector<3x64xf32>
    %c0_105 = arith.constant 0 : index
    %c0_106 = arith.constant 0 : index
    %c0_107 = arith.constant 0 : index
    %346 = vector.load %arg12[%c0_105, %c0_106, %c0_107] : memref<1x3x64xf32, #tpu.memory_space<vmem>>, vector<1x3x64xf32>
    %347 = vector.shape_cast %346 : vector<1x3x64xf32> to vector<3x64xf32>
    %348 = vector.shape_cast %345 : vector<3x64xf32> to vector<1x3x64xf32>
    tpu.vector_store %arg12[%c0_105, %c0_106, %c0_107], %348 {strides = array<i32>} : memref<1x3x64xf32, #tpu.memory_space<vmem>>, vector<1x3x64xf32>,
    return
  }
  func.func @transform_0(%arg0: i32) -> (i32, i32, i32) {
    %c0_i32 = arith.constant 0 : i32
    %c0_i32_0 = arith.constant 0 : i32
    %c0_i32_1 = arith.constant 0 : i32
    return %arg0, %c0_i32, %c0_i32_0 : i32, i32, i32
  }
  func.func @transform_1(%arg0: i32) -> (i32, i32, i32) {
    %c0_i32 = arith.constant 0 : i32
    %c0_i32_0 = arith.constant 0 : i32
    %c0_i32_1 = arith.constant 0 : i32
    %c0_i32_2 = arith.constant 0 : i32
    return %c0_i32, %c0_i32_0, %c0_i32_1 : i32, i32, i32
  }
  func.func @transform_2(%arg0: i32) -> (i32, i32) {
    %c0_i32 = arith.constant 0 : i32
    %c0_i32_0 = arith.constant 0 : i32
    %c0_i32_1 = arith.constant 0 : i32
    return %c0_i32, %c0_i32_0 : i32, i32
  }
  func.func @transform_3(%arg0: i32) -> (i32, i32, i32) {
    %c0_i32 = arith.constant 0 : i32
    %c0_i32_0 = arith.constant 0 : i32
    %c0_i32_1 = arith.constant 0 : i32
    %c0_i32_2 = arith.constant 0 : i32
    return %c0_i32, %c0_i32_0, %c0_i32_1 : i32, i32, i32
  }
  func.func @transform_4(%arg0: i32) -> (i32, i32) {
    %c0_i32 = arith.constant 0 : i32
    %c0_i32_0 = arith.constant 0 : i32
    %c0_i32_1 = arith.constant 0 : i32
    return %c0_i32, %c0_i32_0 : i32, i32
  }
  func.func @transform_5(%arg0: i32) -> (i32, i32, i32) {
    %c0_i32 = arith.constant 0 : i32
    %c0_i32_0 = arith.constant 0 : i32
    %c0_i32_1 = arith.constant 0 : i32
    %c0_i32_2 = arith.constant 0 : i32
    return %c0_i32, %c0_i32_0, %c0_i32_1 : i32, i32, i32
  }
  func.func @transform_6(%arg0: i32) -> (i32, i32) {
    %c0_i32 = arith.constant 0 : i32
    %c0_i32_0 = arith.constant 0 : i32
    %c0_i32_1 = arith.constant 0 : i32
    return %c0_i32, %c0_i32_0 : i32, i32
  }
  func.func @transform_7(%arg0: i32) -> (i32, i32, i32) {
    %c0_i32 = arith.constant 0 : i32
    %c0_i32_0 = arith.constant 0 : i32
    %c0_i32_1 = arith.constant 0 : i32
    %c0_i32_2 = arith.constant 0 : i32
    return %c0_i32, %c0_i32_0, %c0_i32_1 : i32, i32, i32
  }
  func.func @transform_8(%arg0: i32) -> (i32, i32) {
    %c0_i32 = arith.constant 0 : i32
    %c0_i32_0 = arith.constant 0 : i32
    %c0_i32_1 = arith.constant 0 : i32
    return %c0_i32, %c0_i32_0 : i32, i32
  }
  func.func @transform_9(%arg0: i32) -> (i32, i32) {
    %c0_i32 = arith.constant 0 : i32
    %c0_i32_0 = arith.constant 0 : i32
    %c0_i32_1 = arith.constant 0 : i32
    return %c0_i32, %c0_i32_0 : i32, i32
  }
  func.func @transform_10(%arg0: i32) -> (i32, i32) {
    %c0_i32 = arith.constant 0 : i32
    %c0_i32_0 = arith.constant 0 : i32
    %c0_i32_1 = arith.constant 0 : i32
    return %c0_i32, %c0_i32_0 : i32, i32
  }
  func.func @transform_11(%arg0: i32) -> (i32, i32, i32) {
    %c0_i32 = arith.constant 0 : i32
    %c0_i32_0 = arith.constant 0 : i32
    %c0_i32_1 = arith.constant 0 : i32
    return %arg0, %c0_i32, %c0_i32_0 : i32, i32, i32
  }
}

</mosaic_0001>

<llo_original>
// kernel: tpu_custom_call.1
$region0: #{tpu_custom_call.1}
  #allocation0 [shape = 'u32[]', space=smem, size = 0x4, offset = 0x4, fixed_abs, tag = 'smem constant byte address 0x4 - core index']
  #allocation1 [shape = 'u32[72,128]{1,0:T(1,128)}', space=vmem, size = 0x9000, scoped, tag = 'internal scratch']
  %s0 = inlined_call_operand.vmem [shape: f32[2,2,16], index: 0, kind: input, shape index: {}]
  %s1 = inlined_call_operand.vmem [shape: f32[9,8,2], index: 1, kind: input, shape index: {}]
  %s2 = inlined_call_operand.vmem [shape: f32[8,1], index: 2, kind: input, shape index: {}]
  %s3 = inlined_call_operand.vmem [shape: f32[9,8,8], index: 3, kind: input, shape index: {}]
  %s4 = inlined_call_operand.vmem [shape: f32[8,1], index: 4, kind: input, shape index: {}]
  %s5 = inlined_call_operand.vmem [shape: f32[9,16,8], index: 5, kind: input, shape index: {}]
  %s6 = inlined_call_operand.vmem [shape: f32[16,1], index: 6, kind: input, shape index: {}]
  %s7 = inlined_call_operand.vmem [shape: f32[9,16,16], index: 7, kind: input, shape index: {}]
  %s8 = inlined_call_operand.vmem [shape: f32[16,1], index: 8, kind: input, shape index: {}]
  %s9 = inlined_call_operand.vmem [shape: f32[3,16], index: 9, kind: input, shape index: {}]
  %s10 = inlined_call_operand.vmem [shape: f32[3,1], index: 10, kind: input, shape index: {}]
  %s11 = inlined_call_operand.vmem [shape: f32[2,3,64], index: 11, kind: output, shape index: {}]
  %s12 = sld [smem:[#allocation0]]
  $region77: #{tpu_custom_call.1} parent=0
    _
  %s14 = ssub.s32 1, %s12
  %s15 = scalar_select 0, %s14, %s12
  loop: start=0, step=1, limit=4
  $region2: #{tpu_custom_call.1} parent=0 // loop_pre_header
    _
  $region3: #{tpu_custom_call.1} parent=0 // loop_header
    %s17 = sphi 0, %s21
    %p18 = scmp.ge.s32.totalorder %s17, 4
    %s27 = sphi 0, %s29
    %s30 = sphi 0, %s27
    %s31 = sphi 0, %s30
    %s47 = sphi 0, %s31
    %s51 = sphi 0, %s51
    %s53 = sphi 0, %s51
    %s54 = sphi 0, %s53
    %s68 = sphi 0, %s54
    %s72 = sphi 0, %s72
    %s74 = sphi 0, %s72
    %s75 = sphi 0, %s74
    %s89 = sphi 0, %s75
    %s93 = sphi 0, %s93
    %s95 = sphi 0, %s93
    %s96 = sphi 0, %s95
    %s110 = sphi 0, %s96
    %s114 = sphi 0, %s114
    %s116 = sphi 0, %s114
    %s117 = sphi 0, %s116
    %s131 = sphi 0, %s117
    %s135 = sphi 0, %s135
    %s137 = sphi 0, %s135
    %s138 = sphi 0, %s137
    %s152 = sphi 0, %s138
    %s156 = sphi 0, %s156
    %s158 = sphi 0, %s156
    %s159 = sphi 0, %s158
    %s173 = sphi 0, %s159
    %s177 = sphi 0, %s177
    %s179 = sphi 0, %s177
    %s180 = sphi 0, %s179
    %s194 = sphi 0, %s180
    %s198 = sphi 0, %s198
    %s200 = sphi 0, %s198
    %s201 = sphi 0, %s200
    %s215 = sphi 0, %s201
    %s219 = sphi 0, %s219
    %s221 = sphi 0, %s219
    %s222 = sphi 0, %s221
    %s236 = sphi 0, %s222
    %s240 = sphi 0, %s240
    %s242 = sphi 0, %s240
    %s243 = sphi 0, %s242
    %s257 = sphi 0, %s243
    %s263 = sphi 0, %s265
    %s266 = sphi 0, %s263
    %s267 = sphi 0, %s266
    %s283 = sphi 0, %s267
  $region4: #{tpu_custom_call.1} parent=0 // loop_header_branch
    %20 = sbr.rel (%p18) target = $region8
  $region5: #{tpu_custom_call.1} parent=0 // loop_body
    %s22 = ssub.s32 %s17, 1
    %s23 = ssub.s32 %s17, 2
    %s24 = sadd.s32 %s17, 1
    %s25 = ssub.s32 %s17, %s24
    %p26 = scmp.eq.s32.totalorder %s25, 0
    %s28 = sadd.s32 %s27, 1
    %s29 = scalar_select %p26, %s27, %s28
    %p32 = pneg %p26
    %p33 = scmp.eq.s32.totalorder %s17, 1
    %p34 = por %p32, %p33
    %p35 = scmp.ne.s32.totalorder %s27, %s30
    %p36 = scmp.eq.s32.totalorder %s17, 0
    %p37 = por %p35, %p36
    %p38 = scmp.ne.s32.totalorder %s27, %s30
    %p39 = scmp.eq.s32.totalorder %s22, 1
    %p40 = por %p38, %p39
    %p41 = scmp.ne.s32.totalorder %s30, %s31
    %p42 = scmp.eq.s32.totalorder %s22, 0
    %p43 = por %p41, %p42
    %p44 = scmp.ne.s32.totalorder %s30, %s31
    %p45 = scmp.eq.s32.totalorder %s23, 1
    %p46 = por %p44, %p45
    %p48 = scmp.ne.s32.totalorder %s31, %s47
    %p49 = scmp.eq.s32.totalorder %s23, 0
    %p50 = por %p48, %p49
    %s52 = sadd.s32 %s51, 1
    %p55 = scmp.eq.s32.totalorder %s17, 1
    %p56 = scmp.ne.s32.totalorder %s51, %s53
    %p57 = scmp.eq.s32.totalorder %s17, 0
    %p58 = por %p56, %p57
    %p59 = scmp.ne.s32.totalorder %s51, %s53
    %p60 = scmp.eq.s32.totalorder %s22, 1
    %p61 = por %p59, %p60
    %p62 = scmp.ne.s32.totalorder %s53, %s54
    %p63 = scmp.eq.s32.totalorder %s22, 0
    %p64 = por %p62, %p63
    %p65 = scmp.ne.s32.totalorder %s53, %s54
    %p66 = scmp.eq.s32.totalorder %s23, 1
    %p67 = por %p65, %p66
    %p69 = scmp.ne.s32.totalorder %s54, %s68
    %p70 = scmp.eq.s32.totalorder %s23, 0
    %p71 = por %p69, %p70
    %s73 = sadd.s32 %s72, 1
    %p76 = scmp.eq.s32.totalorder %s17, 1
    %p77 = scmp.ne.s32.totalorder %s72, %s74
    %p78 = scmp.eq.s32.totalorder %s17, 0
    %p79 = por %p77, %p78
    %p80 = scmp.ne.s32.totalorder %s72, %s74
    %p81 = scmp.eq.s32.totalorder %s22, 1
    %p82 = por %p80, %p81
    %p83 = scmp.ne.s32.totalorder %s74, %s75
    %p84 = scmp.eq.s32.totalorder %s22, 0
    %p85 = por %p83, %p84
    %p86 = scmp.ne.s32.totalorder %s74, %s75
    %p87 = scmp.eq.s32.totalorder %s23, 1
    %p88 = por %p86, %p87
    %p90 = scmp.ne.s32.totalorder %s75, %s89
    %p91 = scmp.eq.s32.totalorder %s23, 0
    %p92 = por %p90, %p91
    %s94 = sadd.s32 %s93, 1
    %p97 = scmp.eq.s32.totalorder %s17, 1
    %p98 = scmp.ne.s32.totalorder %s93, %s95
    %p99 = scmp.eq.s32.totalorder %s17, 0
    %p100 = por %p98, %p99
    %p101 = scmp.ne.s32.totalorder %s93, %s95
    %p102 = scmp.eq.s32.totalorder %s22, 1
    %p103 = por %p101, %p102
    %p104 = scmp.ne.s32.totalorder %s95, %s96
    %p105 = scmp.eq.s32.totalorder %s22, 0
    %p106 = por %p104, %p105
    %p107 = scmp.ne.s32.totalorder %s95, %s96
    %p108 = scmp.eq.s32.totalorder %s23, 1
    %p109 = por %p107, %p108
    %p111 = scmp.ne.s32.totalorder %s96, %s110
    %p112 = scmp.eq.s32.totalorder %s23, 0
    %p113 = por %p111, %p112
    %s115 = sadd.s32 %s114, 1
    %p118 = scmp.eq.s32.totalorder %s17, 1
    %p119 = scmp.ne.s32.totalorder %s114, %s116
    %p120 = scmp.eq.s32.totalorder %s17, 0
    %p121 = por %p119, %p120
    %p122 = scmp.ne.s32.totalorder %s114, %s116
    %p123 = scmp.eq.s32.totalorder %s22, 1
    %p124 = por %p122, %p123
    %p125 = scmp.ne.s32.totalorder %s116, %s117
    %p126 = scmp.eq.s32.totalorder %s22, 0
    %p127 = por %p125, %p126
    %p128 = scmp.ne.s32.totalorder %s116, %s117
    %p129 = scmp.eq.s32.totalorder %s23, 1
    %p130 = por %p128, %p129
    %p132 = scmp.ne.s32.totalorder %s117, %s131
    %p133 = scmp.eq.s32.totalorder %s23, 0
    %p134 = por %p132, %p133
    %s136 = sadd.s32 %s135, 1
    %p139 = scmp.eq.s32.totalorder %s17, 1
    %p140 = scmp.ne.s32.totalorder %s135, %s137
    %p141 = scmp.eq.s32.totalorder %s17, 0
    %p142 = por %p140, %p141
    %p143 = scmp.ne.s32.totalorder %s135, %s137
    %p144 = scmp.eq.s32.totalorder %s22, 1
    %p145 = por %p143, %p144
    %p146 = scmp.ne.s32.totalorder %s137, %s138
    %p147 = scmp.eq.s32.totalorder %s22, 0
    %p148 = por %p146, %p147
    %p149 = scmp.ne.s32.totalorder %s137, %s138
    %p150 = scmp.eq.s32.totalorder %s23, 1
    %p151 = por %p149, %p150
    %p153 = scmp.ne.s32.totalorder %s138, %s152
    %p154 = scmp.eq.s32.totalorder %s23, 0
    %p155 = por %p153, %p154
    %s157 = sadd.s32 %s156, 1
    %p160 = scmp.eq.s32.totalorder %s17, 1
    %p161 = scmp.ne.s32.totalorder %s156, %s158
    %p162 = scmp.eq.s32.totalorder %s17, 0
    %p163 = por %p161, %p162
    %p164 = scmp.ne.s32.totalorder %s156, %s158
    %p165 = scmp.eq.s32.totalorder %s22, 1
    %p166 = por %p164, %p165
    %p167 = scmp.ne.s32.totalorder %s158, %s159
    %p168 = scmp.eq.s32.totalorder %s22, 0
    %p169 = por %p167, %p168
    %p170 = scmp.ne.s32.totalorder %s158, %s159
    %p171 = scmp.eq.s32.totalorder %s23, 1
    %p172 = por %p170, %p171
    %p174 = scmp.ne.s32.totalorder %s159, %s173
    %p175 = scmp.eq.s32.totalorder %s23, 0
    %p176 = por %p174, %p175
    %s178 = sadd.s32 %s177, 1
    %p181 = scmp.eq.s32.totalorder %s17, 1
    %p182 = scmp.ne.s32.totalorder %s177, %s179
    %p183 = scmp.eq.s32.totalorder %s17, 0
    %p184 = por %p182, %p183
    %p185 = scmp.ne.s32.totalorder %s177, %s179
    %p186 = scmp.eq.s32.totalorder %s22, 1
    %p187 = por %p185, %p186
    %p188 = scmp.ne.s32.totalorder %s179, %s180
    %p189 = scmp.eq.s32.totalorder %s22, 0
    %p190 = por %p188, %p189
    %p191 = scmp.ne.s32.totalorder %s179, %s180
    %p192 = scmp.eq.s32.totalorder %s23, 1
    %p193 = por %p191, %p192
    %p195 = scmp.ne.s32.totalorder %s180, %s194
    %p196 = scmp.eq.s32.totalorder %s23, 0
    %p197 = por %p195, %p196
    %s199 = sadd.s32 %s198, 1
    %p202 = scmp.eq.s32.totalorder %s17, 1
    %p203 = scmp.ne.s32.totalorder %s198, %s200
    %p204 = scmp.eq.s32.totalorder %s17, 0
    %p205 = por %p203, %p204
    %p206 = scmp.ne.s32.totalorder %s198, %s200
    %p207 = scmp.eq.s32.totalorder %s22, 1
    %p208 = por %p206, %p207
    %p209 = scmp.ne.s32.totalorder %s200, %s201
    %p210 = scmp.eq.s32.totalorder %s22, 0
    %p211 = por %p209, %p210
    %p212 = scmp.ne.s32.totalorder %s200, %s201
    %p213 = scmp.eq.s32.totalorder %s23, 1
    %p214 = por %p212, %p213
    %p216 = scmp.ne.s32.totalorder %s201, %s215
    %p217 = scmp.eq.s32.totalorder %s23, 0
    %p218 = por %p216, %p217
    %s220 = sadd.s32 %s219, 1
    %p223 = scmp.eq.s32.totalorder %s17, 1
    %p224 = scmp.ne.s32.totalorder %s219, %s221
    %p225 = scmp.eq.s32.totalorder %s17, 0
    %p226 = por %p224, %p225
    %p227 = scmp.ne.s32.totalorder %s219, %s221
    %p228 = scmp.eq.s32.totalorder %s22, 1
    %p229 = por %p227, %p228
    %p230 = scmp.ne.s32.totalorder %s221, %s222
    %p231 = scmp.eq.s32.totalorder %s22, 0
    %p232 = por %p230, %p231
    %p233 = scmp.ne.s32.totalorder %s221, %s222
    %p234 = scmp.eq.s32.totalorder %s23, 1
    %p235 = por %p233, %p234
    %p237 = scmp.ne.s32.totalorder %s222, %s236
    %p238 = scmp.eq.s32.totalorder %s23, 0
    %p239 = por %p237, %p238
    %s241 = sadd.s32 %s240, 1
    %p244 = scmp.eq.s32.totalorder %s17, 1
    %p245 = scmp.ne.s32.totalorder %s240, %s242
    %p246 = scmp.eq.s32.totalorder %s17, 0
    %p247 = por %p245, %p246
    %p248 = scmp.ne.s32.totalorder %s240, %s242
    %p249 = scmp.eq.s32.totalorder %s22, 1
    %p250 = por %p248, %p249
    %p251 = scmp.ne.s32.totalorder %s242, %s243
    %p252 = scmp.eq.s32.totalorder %s22, 0
    %p253 = por %p251, %p252
    %p254 = scmp.ne.s32.totalorder %s242, %s243
    %p255 = scmp.eq.s32.totalorder %s23, 1
    %p256 = por %p254, %p255
    %p258 = scmp.ne.s32.totalorder %s243, %s257
    %p259 = scmp.eq.s32.totalorder %s23, 0
    %p260 = por %p258, %p259
    %s261 = ssub.s32 %s17, %s24
    %p262 = scmp.eq.s32.totalorder %s261, 0
    %s264 = sadd.s32 %s263, 1
    %s265 = scalar_select %p262, %s263, %s264
    %p268 = pneg %p262
    %p269 = scmp.eq.s32.totalorder %s17, 1
    %p270 = por %p268, %p269
    %p271 = scmp.ne.s32.totalorder %s263, %s266
    %p272 = scmp.eq.s32.totalorder %s17, 0
    %p273 = por %p271, %p272
    %p274 = scmp.ne.s32.totalorder %s263, %s266
    %p275 = scmp.eq.s32.totalorder %s22, 1
    %p276 = por %p274, %p275
    %p277 = scmp.ne.s32.totalorder %s266, %s267
    %p278 = scmp.eq.s32.totalorder %s22, 0
    %p279 = por %p277, %p278
    %p280 = scmp.ne.s32.totalorder %s266, %s267
    %p281 = scmp.eq.s32.totalorder %s23, 1
    %p282 = por %p280, %p281
    %p284 = scmp.ne.s32.totalorder %s267, %s283
    %p285 = scmp.eq.s32.totalorder %s23, 0
    %p286 = por %p284, %p285
    %p287 = scmp.le.s32.totalorder 1, %s17
    %p288 = scmp.lt.s32.totalorder %s17, 3
    %p289 = pnand %p287, %p288
    %p290 = pneg %p289
    // Predicated region
    $region9: #{tpu_custom_call.1} parent=5 // pred_check
      _
    $region10: #{tpu_custom_call.1} parent=5 // pred_check_branch
      %292 = sbr.rel (%p289) target = $region12
    $region11: #{tpu_custom_call.1} parent=5 // pred_region
      %s293 = ssub.s32 %s17, 1
      // Predicated region
      $region13: #{tpu_custom_call.1} parent=11 // pred_check
        %p294 = pneg %p64
      $region14: #{tpu_custom_call.1} parent=11 // pred_check_branch
        %296 = sbr.rel (%p294) target = $region16
      $region15: #{tpu_custom_call.1} parent=11 // pred_region
        _
      $region16: #{tpu_custom_call.1} parent=11 // pred_fallthru
        _
      // Predicated region
      $region17: #{tpu_custom_call.1} parent=11 // pred_check
        %p297 = pneg %p85
      $region18: #{tpu_custom_call.1} parent=11 // pred_check_branch
        %299 = sbr.rel (%p297) target = $region20
      $region19: #{tpu_custom_call.1} parent=11 // pred_region
        _
      $region20: #{tpu_custom_call.1} parent=11 // pred_fallthru
        _
      // Predicated region
      $region21: #{tpu_custom_call.1} parent=11 // pred_check
        %p300 = pneg %p106
      $region22: #{tpu_custom_call.1} parent=11 // pred_check_branch
        %302 = sbr.rel (%p300) target = $region24
      $region23: #{tpu_custom_call.1} parent=11 // pred_region
        _
      $region24: #{tpu_custom_call.1} parent=11 // pred_fallthru
        _
      // Predicated region
      $region25: #{tpu_custom_call.1} parent=11 // pred_check
        %p303 = pneg %p127
      $region26: #{tpu_custom_call.1} parent=11 // pred_check_branch
        %305 = sbr.rel (%p303) target = $region28
      $region27: #{tpu_custom_call.1} parent=11 // pred_region
        _
      $region28: #{tpu_custom_call.1} parent=11 // pred_fallthru
        _
      // Predicated region
      $region29: #{tpu_custom_call.1} parent=11 // pred_check
        %p306 = pneg %p148
      $region30: #{tpu_custom_call.1} parent=11 // pred_check_branch
        %308 = sbr.rel (%p306) target = $region32
      $region31: #{tpu_custom_call.1} parent=11 // pred_region
        _
      $region32: #{tpu_custom_call.1} parent=11 // pred_fallthru
        _
      // Predicated region
      $region33: #{tpu_custom_call.1} parent=11 // pred_check
        %p309 = pneg %p169
      $region34: #{tpu_custom_call.1} parent=11 // pred_check_branch
        %311 = sbr.rel (%p309) target = $region36
      $region35: #{tpu_custom_call.1} parent=11 // pred_region
        _
      $region36: #{tpu_custom_call.1} parent=11 // pred_fallthru
        _
      // Predicated region
      $region37: #{tpu_custom_call.1} parent=11 // pred_check
        %p312 = pneg %p190
      $region38: #{tpu_custom_call.1} parent=11 // pred_check_branch
        %314 = sbr.rel (%p312) target = $region40
      $region39: #{tpu_custom_call.1} parent=11 // pred_region
        _
      $region40: #{tpu_custom_call.1} parent=11 // pred_fallthru
        _
      // Predicated region
      $region41: #{tpu_custom_call.1} parent=11 // pred_check
        %p315 = pneg %p211
      $region42: #{tpu_custom_call.1} parent=11 // pred_check_branch
        %317 = sbr.rel (%p315) target = $region44
      $region43: #{tpu_custom_call.1} parent=11 // pred_region
        _
      $region44: #{tpu_custom_call.1} parent=11 // pred_fallthru
        _
      // Predicated region
      $region45: #{tpu_custom_call.1} parent=11 // pred_check
        %p318 = pneg %p232
      $region46: #{tpu_custom_call.1} parent=11 // pred_check_branch
        %320 = sbr.rel (%p318) target = $region48
      $region47: #{tpu_custom_call.1} parent=11 // pred_region
        _
      $region48: #{tpu_custom_call.1} parent=11 // pred_fallthru
        _
      // Predicated region
      $region49: #{tpu_custom_call.1} parent=11 // pred_check
        %p321 = pneg %p253
      $region50: #{tpu_custom_call.1} parent=11 // pred_check_branch
        %323 = sbr.rel (%p321) target = $region52
      $region51: #{tpu_custom_call.1} parent=11 // pred_region
        _
      $region52: #{tpu_custom_call.1} parent=11 // pred_fallthru
        _
    $region12: #{tpu_custom_call.1} parent=5 // pred_fallthru
      _
    %p324 = scmp.lt.s32.totalorder %s17, 2
    // Predicated region
    $region53: #{tpu_custom_call.1} parent=5 // pred_check
      %p325 = pneg %p324
    $region54: #{tpu_custom_call.1} parent=5 // pred_check_branch
      %327 = sbr.rel (%p325) target = $region56
    $region55: #{tpu_custom_call.1} parent=5 // pred_region
      // Predicated region
      $region57: #{tpu_custom_call.1} parent=55 // pred_check
        %p328 = pneg %p37
      $region58: #{tpu_custom_call.1} parent=55 // pred_check_branch
        %330 = sbr.rel (%p328) target = $region60
      $region59: #{tpu_custom_call.1} parent=55 // pred_region
        %p331 = scmp.lt.s32.totalorder %s17, 1
        %s332 = scalar_select %p331, %s17, 1
        %s333 = smul.addr %s332, 2
        %s334 = scalar_lea.vmem %s0, %s333
      $region60: #{tpu_custom_call.1} parent=55 // pred_fallthru
        _
    $region56: #{tpu_custom_call.1} parent=5 // pred_fallthru
      _
    %p335 = scmp.le.s32.totalorder 1, %s17
    %p336 = scmp.lt.s32.totalorder %s17, 3
    %p337 = pnand %p335, %p336
    %p338 = pneg %p337
    // Predicated region
    $region61: #{tpu_custom_call.1} parent=5 // pred_check
      _
    $region62: #{tpu_custom_call.1} parent=5 // pred_check_branch
      %340 = sbr.rel (%p337) target = $region64
    $region63: #{tpu_custom_call.1} parent=5 // pred_region
      %s341 = ssub.s32 %s17, 1
      %p342 = scmp.lt.s32.totalorder %s22, 1
      %s343 = scalar_select %p342, %s22, 1
      %s344 = smul.addr %s343, 2
      %s345 = scalar_lea.vmem %s0, %s344
      %p346 = pneg %p43
      %p347 = pneg %p40
      %p348 = pneg %p64
      %p349 = pneg %p61
      %p350 = pneg %p85
      %p351 = pneg %p82
      %p352 = pneg %p106
      %p353 = pneg %p103
      %p354 = pneg %p127
      %p355 = pneg %p124
      %p356 = pneg %p148
      %p357 = pneg %p145
      %p358 = pneg %p169
      %p359 = pneg %p166
      %p360 = pneg %p190
      %p361 = pneg %p187
      %p362 = pneg %p211
      %p363 = pneg %p208
      %p364 = pneg %p232
      %p365 = pneg %p229
      %p366 = pneg %p253
      %p367 = pneg %p250
      %p368 = pneg %p279
      %p369 = pneg %p276
      %p370 = scmp.lt.s32.totalorder %s22, 1
      %s371 = scalar_select %p370, %s22, 1
      %s372 = smul.addr %s371, 4
      %s373 = scalar_lea.vmem %s11, %s372
      %p374 = scmp.lt.s32.totalorder %s22, 1
      %s375 = scalar_select %p374, %s22, 1
      %s376 = smul.addr %s375, 2
      %s377 = scalar_lea.vmem %s0, %s376
      %p378 = scmp.lt.s32.totalorder %s22, 1
      %s379 = scalar_select %p378, %s22, 1
      %s380 = smul.addr %s379, 4
      %s381 = scalar_lea.vmem %s11, %s380
      %v382 = vld [vmem:[%s377] sm:$0x3]
      %v383 = vld [vmem:[%s1] sm:$0xff]
      %v384 = vld [vmem:[%s1 + $0x8] sm:$0xff]
      %v385 = vld [vmem:[%s1 + $0x10] sm:$0xff]
      %v386 = vld [vmem:[%s1 + $0x18] sm:$0xff]
      %v387 = vld [vmem:[%s1 + $0x20] sm:$0xff]
      %v388 = vld [vmem:[%s1 + $0x28] sm:$0xff]
      %v389 = vld [vmem:[%s1 + $0x30] sm:$0xff]
      %v390 = vld [vmem:[%s1 + $0x38] sm:$0xff]
      %v391 = vld [vmem:[%s1 + $0x40] sm:$0xff]
      %v392 = vld [vmem:[%s2] sm:$0xff]
      %394 = vrot.lane.b32.xlu0 %v382, 5
      %v395 = vpop.permute.xlu0 %394
      %vm397 = vcmask 39936
      %v398 = vsel %vm397, 0.0, %v395
      %vm399 = vcmask 171008
      %v400 = vsel %vm399, %v398, 0.0
      %v401 = vlaneseq
      %v402 = vand.u32 %v401, 127
      %v403 = vand.u32 %v402, 3
      %vm404 = vcmp.ne.s32.totalorder %v403, 0
      %v405 = vsel %vm404, 1.0, 0.0
      %vm406 = vcmp.ne.s32.totalorder %v403, 3
      %v407 = vsel %vm406, 1.0, 0.0
      %v408 = vmul.f32 %v400, %v405
      %410 = vrot.lane.b32.xlu0 %v400, 127
      %v411 = vpop.permute.xlu0 %410
      %vm412 = vcmask 15360
      %v414 = vsel %vm412, %v384, 0
      %vm416 = vcmask 1041408
      %v417 = vsel %vm416, %v411, 0
      %419 = vmatpush.msra.mxu0 0.0
      %420 = vmatpush.msra.mxu0 0.0
      %421 = vmatpush.msra.mxu0 0.0
      %422 = vmatpush.msra.mxu0 0.0
      %423 = vmatpush.msra.mxu0 0.0
      %424 = vmatpush.msra.mxu0 0.0
      %425 = vmatpush.msra.mxu0 0.0
      %426 = vmatpush.msra.mxu0 0.0
      %427 = vmatpush.msra.mxu0 0.0
      %428 = vmatpush.msra.mxu0 0.0
      %429 = vmatpush.msra.mxu0 0.0
      %430 = vmatpush.msra.mxu0 0.0
      %431 = vmatpush.msra.mxu0 0.0
      %432 = vmatpush.msra.mxu0 0.0
      %433 = vmatpush.msra.mxu0 0.0
      %434 = vmatpush.msra.mxu0 %v417
      %435 = vmatmul.f32.gmra.mxu0 %v414
      %v436 = vpop.f32.mrf.mxu0
      %v437 = vadd.f32 0.0, %v436
      %438 = vdwg.mxu0
      %v440 = vsel %vm412, %v383, 0
      %v443 = vsel %vm416, %v408, 0
      %445 = vmatpush.msra.mxu0 0.0
      %446 = vmatpush.msra.mxu0 0.0
      %447 = vmatpush.msra.mxu0 0.0
      %448 = vmatpush.msra.mxu0 0.0
      %449 = vmatpush.msra.mxu0 0.0
      %450 = vmatpush.msra.mxu0 0.0
      %451 = vmatpush.msra.mxu0 0.0
      %452 = vmatpush.msra.mxu0 0.0
      %453 = vmatpush.msra.mxu0 0.0
      %454 = vmatpush.msra.mxu0 0.0
      %455 = vmatpush.msra.mxu0 0.0
      %456 = vmatpush.msra.mxu0 0.0
      %457 = vmatpush.msra.mxu0 0.0
      %458 = vmatpush.msra.mxu0 0.0
      %459 = vmatpush.msra.mxu0 0.0
      %460 = vmatpush.msra.mxu0 %v443
      %461 = vmatmul.f32.gmra.mxu0 %v440
      %v462 = vpop.f32.mrf.mxu0
      %v463 = vadd.f32 %v437, %v462
      %464 = vdwg.mxu0
      %466 = vrot.lane.b32.xlu0 %v407, 2
      %v467 = vpop.permute.xlu0 %466
      %v469 = vmul.f32 %v400, %v467
      %471 = vrot.lane.b32.xlu0 %v469, 126
      %v472 = vpop.permute.xlu0 %471
      %v474 = vsel %vm412, %v385, 0
      %v476 = vsel %vm416, %v472, 0
      %478 = vmatpush.msra.mxu0 0.0
      %479 = vmatpush.msra.mxu0 0.0
      %480 = vmatpush.msra.mxu0 0.0
      %481 = vmatpush.msra.mxu0 0.0
      %482 = vmatpush.msra.mxu0 0.0
      %483 = vmatpush.msra.mxu0 0.0
      %484 = vmatpush.msra.mxu0 0.0
      %485 = vmatpush.msra.mxu0 0.0
      %486 = vmatpush.msra.mxu0 0.0
      %487 = vmatpush.msra.mxu0 0.0
      %488 = vmatpush.msra.mxu0 0.0
      %489 = vmatpush.msra.mxu0 0.0
      %490 = vmatpush.msra.mxu0 0.0
      %491 = vmatpush.msra.mxu0 0.0
      %492 = vmatpush.msra.mxu0 0.0
      %493 = vmatpush.msra.mxu0 %v476
      %494 = vmatmul.f32.gmra.mxu0 %v474
      %v495 = vpop.f32.mrf.mxu0
      %v496 = vadd.f32 0.0, %v495
      %497 = vdwg.mxu0
      %v498 = vadd.f32 %v463, %v496
      %500 = vrot.lane.b32.xlu0 %v405, 4
      %v501 = vpop.permute.xlu0 %500
      %v503 = vmul.f32 %v400, %v501
      %505 = vrot.lane.b32.xlu0 %v503, 124
      %v506 = vpop.permute.xlu0 %505
      %v508 = vsel %vm412, %v386, 0
      %v510 = vsel %vm416, %v506, 0
      %512 = vmatpush.msra.mxu0 0.0
      %513 = vmatpush.msra.mxu0 0.0
      %514 = vmatpush.msra.mxu0 0.0
      %515 = vmatpush.msra.mxu0 0.0
      %516 = vmatpush.msra.mxu0 0.0
      %517 = vmatpush.msra.mxu0 0.0
      %518 = vmatpush.msra.mxu0 0.0
      %519 = vmatpush.msra.mxu0 0.0
      %520 = vmatpush.msra.mxu0 0.0
      %521 = vmatpush.msra.mxu0 0.0
      %522 = vmatpush.msra.mxu0 0.0
      %523 = vmatpush.msra.mxu0 0.0
      %524 = vmatpush.msra.mxu0 0.0
      %525 = vmatpush.msra.mxu0 0.0
      %526 = vmatpush.msra.mxu0 0.0
      %527 = vmatpush.msra.mxu0 %v510
      %528 = vmatmul.f32.gmra.mxu0 %v508
      %v529 = vpop.f32.mrf.mxu0
      %v530 = vadd.f32 0.0, %v529
      %531 = vdwg.mxu0
      %v532 = vadd.f32 %v498, %v530
      %533 = vrot.lane.b32.xlu0 %v400, 123
      %v534 = vpop.permute.xlu0 %533
      %v536 = vsel %vm412, %v387, 0
      %v538 = vsel %vm416, %v534, 0
      %540 = vmatpush.msra.mxu0 0.0
      %541 = vmatpush.msra.mxu0 0.0
      %542 = vmatpush.msra.mxu0 0.0
      %543 = vmatpush.msra.mxu0 0.0
      %544 = vmatpush.msra.mxu0 0.0
      %545 = vmatpush.msra.mxu0 0.0
      %546 = vmatpush.msra.mxu0 0.0
      %547 = vmatpush.msra.mxu0 0.0
      %548 = vmatpush.msra.mxu0 0.0
      %549 = vmatpush.msra.mxu0 0.0
      %550 = vmatpush.msra.mxu0 0.0
      %551 = vmatpush.msra.mxu0 0.0
      %552 = vmatpush.msra.mxu0 0.0
      %553 = vmatpush.msra.mxu0 0.0
      %554 = vmatpush.msra.mxu0 0.0
      %555 = vmatpush.msra.mxu0 %v538
      %556 = vmatmul.f32.gmra.mxu0 %v536
      %v557 = vpop.f32.mrf.mxu0
      %v558 = vadd.f32 0.0, %v557
      %559 = vdwg.mxu0
      %v560 = vadd.f32 %v532, %v558
      %561 = vrot.lane.b32.xlu0 %v407, 6
      %v562 = vpop.permute.xlu0 %561
      %v564 = vmul.f32 %v400, %v562
      %566 = vrot.lane.b32.xlu0 %v564, 122
      %v567 = vpop.permute.xlu0 %566
      %v569 = vsel %vm412, %v388, 0
      %v571 = vsel %vm416, %v567, 0
      %573 = vmatpush.msra.mxu0 0.0
      %574 = vmatpush.msra.mxu0 0.0
      %575 = vmatpush.msra.mxu0 0.0
      %576 = vmatpush.msra.mxu0 0.0
      %577 = vmatpush.msra.mxu0 0.0
      %578 = vmatpush.msra.mxu0 0.0
      %579 = vmatpush.msra.mxu0 0.0
      %580 = vmatpush.msra.mxu0 0.0
      %581 = vmatpush.msra.mxu0 0.0
      %582 = vmatpush.msra.mxu0 0.0
      %583 = vmatpush.msra.mxu0 0.0
      %584 = vmatpush.msra.mxu0 0.0
      %585 = vmatpush.msra.mxu0 0.0
      %586 = vmatpush.msra.mxu0 0.0
      %587 = vmatpush.msra.mxu0 0.0
      %588 = vmatpush.msra.mxu0 %v571
      %589 = vmatmul.f32.gmra.mxu0 %v569
      %v590 = vpop.f32.mrf.mxu0
      %v591 = vadd.f32 0.0, %v590
      %592 = vdwg.mxu0
      %v593 = vadd.f32 %v560, %v591
      %594 = vrot.lane.b32.xlu0 %v405, 8
      %v595 = vpop.permute.xlu0 %594
      %v597 = vmul.f32 %v400, %v595
      %599 = vrot.lane.b32.xlu0 %v597, 120
      %v600 = vpop.permute.xlu0 %599
      %v602 = vsel %vm412, %v389, 0
      %v604 = vsel %vm416, %v600, 0
      %606 = vmatpush.msra.mxu0 0.0
      %607 = vmatpush.msra.mxu0 0.0
      %608 = vmatpush.msra.mxu0 0.0
      %609 = vmatpush.msra.mxu0 0.0
      %610 = vmatpush.msra.mxu0 0.0
      %611 = vmatpush.msra.mxu0 0.0
      %612 = vmatpush.msra.mxu0 0.0
      %613 = vmatpush.msra.mxu0 0.0
      %614 = vmatpush.msra.mxu0 0.0
      %615 = vmatpush.msra.mxu0 0.0
      %616 = vmatpush.msra.mxu0 0.0
      %617 = vmatpush.msra.mxu0 0.0
      %618 = vmatpush.msra.mxu0 0.0
      %619 = vmatpush.msra.mxu0 0.0
      %620 = vmatpush.msra.mxu0 0.0
      %621 = vmatpush.msra.mxu0 %v604
      %622 = vmatmul.f32.gmra.mxu0 %v602
      %v623 = vpop.f32.mrf.mxu0
      %v624 = vadd.f32 0.0, %v623
      %625 = vdwg.mxu0
      %v626 = vadd.f32 %v593, %v624
      %627 = vrot.lane.b32.xlu0 %v400, 119
      %v628 = vpop.permute.xlu0 %627
      %v630 = vsel %vm412, %v390, 0
      %v632 = vsel %vm416, %v628, 0
      %634 = vmatpush.msra.mxu0 0.0
      %635 = vmatpush.msra.mxu0 0.0
      %636 = vmatpush.msra.mxu0 0.0
      %637 = vmatpush.msra.mxu0 0.0
      %638 = vmatpush.msra.mxu0 0.0
      %639 = vmatpush.msra.mxu0 0.0
      %640 = vmatpush.msra.mxu0 0.0
      %641 = vmatpush.msra.mxu0 0.0
      %642 = vmatpush.msra.mxu0 0.0
      %643 = vmatpush.msra.mxu0 0.0
      %644 = vmatpush.msra.mxu0 0.0
      %645 = vmatpush.msra.mxu0 0.0
      %646 = vmatpush.msra.mxu0 0.0
      %647 = vmatpush.msra.mxu0 0.0
      %648 = vmatpush.msra.mxu0 0.0
      %649 = vmatpush.msra.mxu0 %v632
      %650 = vmatmul.f32.gmra.mxu0 %v630
      %v651 = vpop.f32.mrf.mxu0
      %v652 = vadd.f32 0.0, %v651
      %653 = vdwg.mxu0
      %v654 = vadd.f32 %v626, %v652
      %655 = vrot.lane.b32.xlu0 %v407, 10
      %v656 = vpop.permute.xlu0 %655
      %v658 = vmul.f32 %v400, %v656
      %660 = vrot.lane.b32.xlu0 %v658, 118
      %v661 = vpop.permute.xlu0 %660
      %v663 = vsel %vm412, %v391, 0
      %v665 = vsel %vm416, %v661, 0
      %667 = vmatpush.msra.mxu0 0.0
      %668 = vmatpush.msra.mxu0 0.0
      %669 = vmatpush.msra.mxu0 0.0
      %670 = vmatpush.msra.mxu0 0.0
      %671 = vmatpush.msra.mxu0 0.0
      %672 = vmatpush.msra.mxu0 0.0
      %673 = vmatpush.msra.mxu0 0.0
      %674 = vmatpush.msra.mxu0 0.0
      %675 = vmatpush.msra.mxu0 0.0
      %676 = vmatpush.msra.mxu0 0.0
      %677 = vmatpush.msra.mxu0 0.0
      %678 = vmatpush.msra.mxu0 0.0
      %679 = vmatpush.msra.mxu0 0.0
      %680 = vmatpush.msra.mxu0 0.0
      %681 = vmatpush.msra.mxu0 0.0
      %682 = vmatpush.msra.mxu0 %v665
      %683 = vmatmul.f32.gmra.mxu0 %v663
      %v684 = vpop.f32.mrf.mxu0
      %v685 = vadd.f32 0.0, %v684
      %686 = vdwg.mxu0
      %v687 = vadd.f32 %v654, %v685
      %689 = vset.pattern.permute.xlu0 0
      %690 = vperm.xlu0 %689, %v392
      %v691 = vpop.permute.xlu0 %690
      %v693 = vadd.f32 %v687, %v691
      %v694 = vmul.f32 %v693, 0.2
      %v695 = vmax.f32 %v693, %v694
      %v696 = vld [vmem:[%s3] sm:$0xff]
      %v697 = vld [vmem:[%s3 + $0x8] sm:$0xff]
      %v698 = vld [vmem:[%s3 + $0x10] sm:$0xff]
      %v699 = vld [vmem:[%s3 + $0x18] sm:$0xff]
      %v700 = vld [vmem:[%s3 + $0x20] sm:$0xff]
      %v701 = vld [vmem:[%s3 + $0x28] sm:$0xff]
      %v702 = vld [vmem:[%s3 + $0x30] sm:$0xff]
      %v703 = vld [vmem:[%s3 + $0x38] sm:$0xff]
      %v704 = vld [vmem:[%s3 + $0x40] sm:$0xff]
      %v705 = vld [vmem:[%s4] sm:$0xff]
      %707 = vrot.lane.b32.xlu0 %v695, 5
      %v708 = vpop.permute.xlu0 %707
      %v710 = vsel %vm397, 0.0, %v708
      %v711 = vsel %vm399, %v710, 0.0
      %v712 = vmul.f32 %v711, %v405
      %714 = vrot.lane.b32.xlu0 %v711, 127
      %v715 = vpop.permute.xlu0 %714
      %vm717 = vcmask 64512
      %v719 = vsel %vm717, %v697, 0
      %721 = vmatpush.msra.mxu0 0.0
      %722 = vmatpush.msra.mxu0 0.0
      %723 = vmatpush.msra.mxu0 0.0
      %724 = vmatpush.msra.mxu0 0.0
      %725 = vmatpush.msra.mxu0 0.0
      %726 = vmatpush.msra.mxu0 0.0
      %727 = vmatpush.msra.mxu0 0.0
      %728 = vmatpush.msra.mxu0 0.0
      %729 = vmatpush.msra.mxu0 0.0
      %730 = vmatpush.msra.mxu0 0.0
      %731 = vmatpush.msra.mxu0 0.0
      %732 = vmatpush.msra.mxu0 0.0
      %733 = vmatpush.msra.mxu0 0.0
      %734 = vmatpush.msra.mxu0 0.0
      %735 = vmatpush.msra.mxu0 0.0
      %736 = vmatpush.msra.mxu0 %v715
      %737 = vmatmul.f32.gmra.mxu0 %v719
      %v738 = vpop.f32.mrf.mxu0
      %v739 = vadd.f32 0.0, %v738
      %740 = vdwg.mxu0
      %v742 = vsel %vm717, %v696, 0
      %744 = vmatpush.msra.mxu0 0.0
      %745 = vmatpush.msra.mxu0 0.0
      %746 = vmatpush.msra.mxu0 0.0
      %747 = vmatpush.msra.mxu0 0.0
      %748 = vmatpush.msra.mxu0 0.0
      %749 = vmatpush.msra.mxu0 0.0
      %750 = vmatpush.msra.mxu0 0.0
      %751 = vmatpush.msra.mxu0 0.0
      %752 = vmatpush.msra.mxu0 0.0
      %753 = vmatpush.msra.mxu0 0.0
      %754 = vmatpush.msra.mxu0 0.0
      %755 = vmatpush.msra.mxu0 0.0
      %756 = vmatpush.msra.mxu0 0.0
      %757 = vmatpush.msra.mxu0 0.0
      %758 = vmatpush.msra.mxu0 0.0
      %759 = vmatpush.msra.mxu0 %v712
      %760 = vmatmul.f32.gmra.mxu0 %v742
      %v761 = vpop.f32.mrf.mxu0
      %v762 = vadd.f32 %v739, %v761
      %763 = vdwg.mxu0
      %v764 = vmul.f32 %v711, %v467
      %766 = vrot.lane.b32.xlu0 %v764, 126
      %v767 = vpop.permute.xlu0 %766
      %v770 = vsel %vm717, %v698, 0
      %772 = vmatpush.msra.mxu0 0.0
      %773 = vmatpush.msra.mxu0 0.0
      %774 = vmatpush.msra.mxu0 0.0
      %775 = vmatpush.msra.mxu0 0.0
      %776 = vmatpush.msra.mxu0 0.0
      %777 = vmatpush.msra.mxu0 0.0
      %778 = vmatpush.msra.mxu0 0.0
      %779 = vmatpush.msra.mxu0 0.0
      %780 = vmatpush.msra.mxu0 0.0
      %781 = vmatpush.msra.mxu0 0.0
      %782 = vmatpush.msra.mxu0 0.0
      %783 = vmatpush.msra.mxu0 0.0
      %784 = vmatpush.msra.mxu0 0.0
      %785 = vmatpush.msra.mxu0 0.0
      %786 = vmatpush.msra.mxu0 0.0
      %787 = vmatpush.msra.mxu0 %v767
      %788 = vmatmul.f32.gmra.mxu0 %v770
      %v789 = vpop.f32.mrf.mxu0
      %v790 = vadd.f32 0.0, %v789
      %791 = vdwg.mxu0
      %v792 = vadd.f32 %v762, %v790
      %v793 = vmul.f32 %v711, %v501
      %795 = vrot.lane.b32.xlu0 %v793, 124
      %v796 = vpop.permute.xlu0 %795
      %v799 = vsel %vm717, %v699, 0
      %801 = vmatpush.msra.mxu0 0.0
      %802 = vmatpush.msra.mxu0 0.0
      %803 = vmatpush.msra.mxu0 0.0
      %804 = vmatpush.msra.mxu0 0.0
      %805 = vmatpush.msra.mxu0 0.0
      %806 = vmatpush.msra.mxu0 0.0
      %807 = vmatpush.msra.mxu0 0.0
      %808 = vmatpush.msra.mxu0 0.0
      %809 = vmatpush.msra.mxu0 0.0
      %810 = vmatpush.msra.mxu0 0.0
      %811 = vmatpush.msra.mxu0 0.0
      %812 = vmatpush.msra.mxu0 0.0
      %813 = vmatpush.msra.mxu0 0.0
      %814 = vmatpush.msra.mxu0 0.0
      %815 = vmatpush.msra.mxu0 0.0
      %816 = vmatpush.msra.mxu0 %v796
      %817 = vmatmul.f32.gmra.mxu0 %v799
      %v818 = vpop.f32.mrf.mxu0
      %v819 = vadd.f32 0.0, %v818
      %820 = vdwg.mxu0
      %v821 = vadd.f32 %v792, %v819
      %822 = vrot.lane.b32.xlu0 %v711, 123
      %v823 = vpop.permute.xlu0 %822
      %v826 = vsel %vm717, %v700, 0
      %828 = vmatpush.msra.mxu0 0.0
      %829 = vmatpush.msra.mxu0 0.0
      %830 = vmatpush.msra.mxu0 0.0
      %831 = vmatpush.msra.mxu0 0.0
      %832 = vmatpush.msra.mxu0 0.0
      %833 = vmatpush.msra.mxu0 0.0
      %834 = vmatpush.msra.mxu0 0.0
      %835 = vmatpush.msra.mxu0 0.0
      %836 = vmatpush.msra.mxu0 0.0
      %837 = vmatpush.msra.mxu0 0.0
      %838 = vmatpush.msra.mxu0 0.0
      %839 = vmatpush.msra.mxu0 0.0
      %840 = vmatpush.msra.mxu0 0.0
      %841 = vmatpush.msra.mxu0 0.0
      %842 = vmatpush.msra.mxu0 0.0
      %843 = vmatpush.msra.mxu0 %v823
      %844 = vmatmul.f32.gmra.mxu0 %v826
      %v845 = vpop.f32.mrf.mxu0
      %v846 = vadd.f32 0.0, %v845
      %847 = vdwg.mxu0
      %v848 = vadd.f32 %v821, %v846
      %v849 = vmul.f32 %v711, %v562
      %851 = vrot.lane.b32.xlu0 %v849, 122
      %v852 = vpop.permute.xlu0 %851
      %v855 = vsel %vm717, %v701, 0
      %857 = vmatpush.msra.mxu0 0.0
      %858 = vmatpush.msra.mxu0 0.0
      %859 = vmatpush.msra.mxu0 0.0
      %860 = vmatpush.msra.mxu0 0.0
      %861 = vmatpush.msra.mxu0 0.0
      %862 = vmatpush.msra.mxu0 0.0
      %863 = vmatpush.msra.mxu0 0.0
      %864 = vmatpush.msra.mxu0 0.0
      %865 = vmatpush.msra.mxu0 0.0
      %866 = vmatpush.msra.mxu0 0.0
      %867 = vmatpush.msra.mxu0 0.0
      %868 = vmatpush.msra.mxu0 0.0
      %869 = vmatpush.msra.mxu0 0.0
      %870 = vmatpush.msra.mxu0 0.0
      %871 = vmatpush.msra.mxu0 0.0
      %872 = vmatpush.msra.mxu0 %v852
      %873 = vmatmul.f32.gmra.mxu0 %v855
      %v874 = vpop.f32.mrf.mxu0
      %v875 = vadd.f32 0.0, %v874
      %876 = vdwg.mxu0
      %v877 = vadd.f32 %v848, %v875
      %v878 = vmul.f32 %v711, %v595
      %880 = vrot.lane.b32.xlu0 %v878, 120
      %v881 = vpop.permute.xlu0 %880
      %v884 = vsel %vm717, %v702, 0
      %886 = vmatpush.msra.mxu0 0.0
      %887 = vmatpush.msra.mxu0 0.0
      %888 = vmatpush.msra.mxu0 0.0
      %889 = vmatpush.msra.mxu0 0.0
      %890 = vmatpush.msra.mxu0 0.0
      %891 = vmatpush.msra.mxu0 0.0
      %892 = vmatpush.msra.mxu0 0.0
      %893 = vmatpush.msra.mxu0 0.0
      %894 = vmatpush.msra.mxu0 0.0
      %895 = vmatpush.msra.mxu0 0.0
      %896 = vmatpush.msra.mxu0 0.0
      %897 = vmatpush.msra.mxu0 0.0
      %898 = vmatpush.msra.mxu0 0.0
      %899 = vmatpush.msra.mxu0 0.0
      %900 = vmatpush.msra.mxu0 0.0
      %901 = vmatpush.msra.mxu0 %v881
      %902 = vmatmul.f32.gmra.mxu0 %v884
      %v903 = vpop.f32.mrf.mxu0
      %v904 = vadd.f32 0.0, %v903
      %905 = vdwg.mxu0
      %v906 = vadd.f32 %v877, %v904
      %907 = vrot.lane.b32.xlu0 %v711, 119
      %v908 = vpop.permute.xlu0 %907
      %v911 = vsel %vm717, %v703, 0
      %913 = vmatpush.msra.mxu0 0.0
      %914 = vmatpush.msra.mxu0 0.0
      %915 = vmatpush.msra.mxu0 0.0
      %916 = vmatpush.msra.mxu0 0.0
      %917 = vmatpush.msra.mxu0 0.0
      %918 = vmatpush.msra.mxu0 0.0
      %919 = vmatpush.msra.mxu0 0.0
      %920 = vmatpush.msra.mxu0 0.0
      %921 = vmatpush.msra.mxu0 0.0
      %922 = vmatpush.msra.mxu0 0.0
      %923 = vmatpush.msra.mxu0 0.0
      %924 = vmatpush.msra.mxu0 0.0
      %925 = vmatpush.msra.mxu0 0.0
      %926 = vmatpush.msra.mxu0 0.0
      %927 = vmatpush.msra.mxu0 0.0
      %928 = vmatpush.msra.mxu0 %v908
      %929 = vmatmul.f32.gmra.mxu0 %v911
      %v930 = vpop.f32.mrf.mxu0
      %v931 = vadd.f32 0.0, %v930
      %932 = vdwg.mxu0
      %v933 = vadd.f32 %v906, %v931
      %v934 = vmul.f32 %v711, %v656
      %936 = vrot.lane.b32.xlu0 %v934, 118
      %v937 = vpop.permute.xlu0 %936
      %v940 = vsel %vm717, %v704, 0
      %942 = vmatpush.msra.mxu0 0.0
      %943 = vmatpush.msra.mxu0 0.0
      %944 = vmatpush.msra.mxu0 0.0
      %945 = vmatpush.msra.mxu0 0.0
      %946 = vmatpush.msra.mxu0 0.0
      %947 = vmatpush.msra.mxu0 0.0
      %948 = vmatpush.msra.mxu0 0.0
      %949 = vmatpush.msra.mxu0 0.0
      %950 = vmatpush.msra.mxu0 0.0
      %951 = vmatpush.msra.mxu0 0.0
      %952 = vmatpush.msra.mxu0 0.0
      %953 = vmatpush.msra.mxu0 0.0
      %954 = vmatpush.msra.mxu0 0.0
      %955 = vmatpush.msra.mxu0 0.0
      %956 = vmatpush.msra.mxu0 0.0
      %957 = vmatpush.msra.mxu0 %v937
      %958 = vmatmul.f32.gmra.mxu0 %v940
      %v959 = vpop.f32.mrf.mxu0
      %v960 = vadd.f32 0.0, %v959
      %961 = vdwg.mxu0
      %v962 = vadd.f32 %v933, %v960
      %964 = vset.pattern.permute.xlu0 0
      %965 = vperm.xlu0 %964, %v705
      %v966 = vpop.permute.xlu0 %965
      %v968 = vadd.f32 %v962, %v966
      %v969 = vmul.f32 %v968, 0.2
      %v970 = vmax.f32 %v968, %v969
      %v971 = vlaneseq
      %v972 = vshrl.u32 %v971, 7
      %v973 = vadd.s32 %v972, 8
      %v974 = vshra.s32 %v402, 3
      %v975 = vand.u32 %v402, 7
      %v976 = vshra.s32 %v974, 1
      %v977 = vshll.u32 %v976, 2
      %v978 = vshra.s32 %v975, 1
      %v979 = vadd.s32 %v977, %v978
      %vm980 = vcmp.eq.s32.totalorder %v972, %v979
      %vm981 = vcmp.eq.s32.totalorder %v973, %v979
      %v982 = vsel %vm980, 1.0, 0.0
      %v983 = vsel %vm981, 1.0, 0.0
      %vm984 = vcmask 130048
      %v986 = vsel %vm984, %v970, 0
      %988 = vmatpush.msra.mxu0 0.0
      %989 = vmatpush.msra.mxu0 0.0
      %990 = vmatpush.msra.mxu0 0.0
      %991 = vmatpush.msra.mxu0 0.0
      %992 = vmatpush.msra.mxu0 0.0
      %993 = vmatpush.msra.mxu0 0.0
      %994 = vmatpush.msra.mxu0 0.0
      %995 = vmatpush.msra.mxu0 0.0
      %996 = vmatpush.msra.mxu0 0.0
      %997 = vmatpush.msra.mxu0 0.0
      %998 = vmatpush.msra.mxu0 0.0
      %999 = vmatpush.msra.mxu0 0.0
      %1000 = vmatpush.msra.mxu0 0.0
      %1001 = vmatpush.msra.mxu0 0.0
      %1002 = vmatpush.msra.mxu0 %v983
      %1003 = vmatpush.msra.mxu0 %v982
      %1004 = vmatmul.f32.gmra.mxu0 %v986
      %v1005 = vpop.f32.mrf.mxu0
      %v1006 = vadd.f32 0.0, %v1005
      %1007 = vdwg.mxu0
      %v1008 = vld [vmem:[%s5] sm:$0xff]
      %v1009 = vld [vmem:[%s5 + $0x8] sm:$0xff]
      %v1010 = vld [vmem:[%s5 + $0x10] sm:$0xff]
      %v1011 = vld [vmem:[%s5 + $0x18] sm:$0xff]
      %v1012 = vld [vmem:[%s5 + $0x20] sm:$0xff]
      %v1013 = vld [vmem:[%s5 + $0x28] sm:$0xff]
      %v1014 = vld [vmem:[%s5 + $0x30] sm:$0xff]
      %v1015 = vld [vmem:[%s5 + $0x38] sm:$0xff]
      %v1016 = vld [vmem:[%s5 + $0x40] sm:$0xff]
      %v1017 = vld [vmem:[%s5 + $0x48] sm:$0xff]
      %v1018 = vld [vmem:[%s5 + $0x50] sm:$0xff]
      %v1019 = vld [vmem:[%s5 + $0x58] sm:$0xff]
      %v1020 = vld [vmem:[%s5 + $0x60] sm:$0xff]
      %v1021 = vld [vmem:[%s5 + $0x68] sm:$0xff]
      %v1022 = vld [vmem:[%s5 + $0x70] sm:$0xff]
      %v1023 = vld [vmem:[%s5 + $0x78] sm:$0xff]
      %v1024 = vld [vmem:[%s5 + $0x80] sm:$0xff]
      %v1025 = vld [vmem:[%s5 + $0x88] sm:$0xff]
      %v1026 = vld [vmem:[%s6] sm:$0xff]
      %v1027 = vld [vmem:[%s6 + $0x8] sm:$0xff]
      %1029 = vrot.lane.b32.xlu0 %v1006, 9
      %v1030 = vpop.permute.xlu0 %1029
      %vm1032 = vcmask 72704
      %v1033 = vsel %vm1032, 0.0, %v1030
      %vm1034 = vcmask 596992
      %v1035 = vsel %vm1034, %v1033, 0.0
      %vm1036 = vcmp.ne.s32.totalorder %v975, 0
      %v1037 = vsel %vm1036, 1.0, 0.0
      %vm1038 = vcmp.ne.s32.totalorder %v975, 7
      %v1039 = vsel %vm1038, 1.0, 0.0
      %v1040 = vmul.f32 %v1035, %v1037
      %1042 = vrot.lane.b32.xlu0 %v1035, 127
      %v1043 = vpop.permute.xlu0 %1042
      %v1046 = vsel %vm717, %v1010, 0
      %v1049 = vsel %vm717, %v1011, 0
      %1051 = vmatpush.msra.mxu0 0.0
      %1052 = vmatpush.msra.mxu0 0.0
      %1053 = vmatpush.msra.mxu0 0.0
      %1054 = vmatpush.msra.mxu0 0.0
      %1055 = vmatpush.msra.mxu0 0.0
      %1056 = vmatpush.msra.mxu0 0.0
      %1057 = vmatpush.msra.mxu0 0.0
      %1058 = vmatpush.msra.mxu0 0.0
      %1059 = vmatpush.msra.mxu0 0.0
      %1060 = vmatpush.msra.mxu0 0.0
      %1061 = vmatpush.msra.mxu0 0.0
      %1062 = vmatpush.msra.mxu0 0.0
      %1063 = vmatpush.msra.mxu0 0.0
      %1064 = vmatpush.msra.mxu0 0.0
      %1065 = vmatpush.msra.mxu0 0.0
      %1066 = vmatpush.msra.mxu0 %v1043
      %1067 = vmatmul.f32.gmra.mxu0 %v1046
      %v1068 = vpop.f32.mrf.mxu0
      %v1069 = vadd.f32 0.0, %v1068
      %1070 = vmatmul.f32.gmra.mxu0 %v1049
      %v1071 = vpop.f32.mrf.mxu0
      %v1072 = vadd.f32 0.0, %v1071
      %1073 = vdwg.mxu0
      %v1075 = vsel %vm717, %v1008, 0
      %v1078 = vsel %vm717, %v1009, 0
      %1080 = vmatpush.msra.mxu0 0.0
      %1081 = vmatpush.msra.mxu0 0.0
      %1082 = vmatpush.msra.mxu0 0.0
      %1083 = vmatpush.msra.mxu0 0.0
      %1084 = vmatpush.msra.mxu0 0.0
      %1085 = vmatpush.msra.mxu0 0.0
      %1086 = vmatpush.msra.mxu0 0.0
      %1087 = vmatpush.msra.mxu0 0.0
      %1088 = vmatpush.msra.mxu0 0.0
      %1089 = vmatpush.msra.mxu0 0.0
      %1090 = vmatpush.msra.mxu0 0.0
      %1091 = vmatpush.msra.mxu0 0.0
      %1092 = vmatpush.msra.mxu0 0.0
      %1093 = vmatpush.msra.mxu0 0.0
      %1094 = vmatpush.msra.mxu0 0.0
      %1095 = vmatpush.msra.mxu0 %v1040
      %1096 = vmatmul.f32.gmra.mxu0 %v1075
      %v1097 = vpop.f32.mrf.mxu0
      %v1098 = vadd.f32 %v1069, %v1097
      %1099 = vmatmul.f32.gmra.mxu0 %v1078
      %v1100 = vpop.f32.mrf.mxu0
      %v1101 = vadd.f32 %v1072, %v1100
      %1102 = vdwg.mxu0
      %1104 = vrot.lane.b32.xlu0 %v1039, 2
      %v1105 = vpop.permute.xlu0 %1104
      %v1107 = vmul.f32 %v1035, %v1105
      %1109 = vrot.lane.b32.xlu0 %v1107, 126
      %v1110 = vpop.permute.xlu0 %1109
      %v1113 = vsel %vm717, %v1012, 0
      %v1116 = vsel %vm717, %v1013, 0
      %1118 = vmatpush.msra.mxu0 0.0
      %1119 = vmatpush.msra.mxu0 0.0
      %1120 = vmatpush.msra.mxu0 0.0
      %1121 = vmatpush.msra.mxu0 0.0
      %1122 = vmatpush.msra.mxu0 0.0
      %1123 = vmatpush.msra.mxu0 0.0
      %1124 = vmatpush.msra.mxu0 0.0
      %1125 = vmatpush.msra.mxu0 0.0
      %1126 = vmatpush.msra.mxu0 0.0
      %1127 = vmatpush.msra.mxu0 0.0
      %1128 = vmatpush.msra.mxu0 0.0
      %1129 = vmatpush.msra.mxu0 0.0
      %1130 = vmatpush.msra.mxu0 0.0
      %1131 = vmatpush.msra.mxu0 0.0
      %1132 = vmatpush.msra.mxu0 0.0
      %1133 = vmatpush.msra.mxu0 %v1110
      %1134 = vmatmul.f32.gmra.mxu0 %v1113
      %v1135 = vpop.f32.mrf.mxu0
      %v1136 = vadd.f32 0.0, %v1135
      %1137 = vmatmul.f32.gmra.mxu0 %v1116
      %v1138 = vpop.f32.mrf.mxu0
      %v1139 = vadd.f32 0.0, %v1138
      %1140 = vdwg.mxu0
      %v1141 = vadd.f32 %v1098, %v1136
      %v1142 = vadd.f32 %v1101, %v1139
      %1144 = vrot.lane.b32.xlu0 %v1037, 8
      %v1145 = vpop.permute.xlu0 %1144
      %v1147 = vmul.f32 %v1035, %v1145
      %1149 = vrot.lane.b32.xlu0 %v1147, 120
      %v1150 = vpop.permute.xlu0 %1149
      %v1153 = vsel %vm717, %v1014, 0
      %v1156 = vsel %vm717, %v1015, 0
      %1158 = vmatpush.msra.mxu0 0.0
      %1159 = vmatpush.msra.mxu0 0.0
      %1160 = vmatpush.msra.mxu0 0.0
      %1161 = vmatpush.msra.mxu0 0.0
      %1162 = vmatpush.msra.mxu0 0.0
      %1163 = vmatpush.msra.mxu0 0.0
      %1164 = vmatpush.msra.mxu0 0.0
      %1165 = vmatpush.msra.mxu0 0.0
      %1166 = vmatpush.msra.mxu0 0.0
      %1167 = vmatpush.msra.mxu0 0.0
      %1168 = vmatpush.msra.mxu0 0.0
      %1169 = vmatpush.msra.mxu0 0.0
      %1170 = vmatpush.msra.mxu0 0.0
      %1171 = vmatpush.msra.mxu0 0.0
      %1172 = vmatpush.msra.mxu0 0.0
      %1173 = vmatpush.msra.mxu0 %v1150
      %1174 = vmatmul.f32.gmra.mxu0 %v1153
      %v1175 = vpop.f32.mrf.mxu0
      %v1176 = vadd.f32 0.0, %v1175
      %1177 = vmatmul.f32.gmra.mxu0 %v1156
      %v1178 = vpop.f32.mrf.mxu0
      %v1179 = vadd.f32 0.0, %v1178
      %1180 = vdwg.mxu0
      %v1181 = vadd.f32 %v1141, %v1176
      %v1182 = vadd.f32 %v1142, %v1179
      %1183 = vrot.lane.b32.xlu0 %v1035, 119
      %v1184 = vpop.permute.xlu0 %1183
      %v1187 = vsel %vm717, %v1016, 0
      %v1190 = vsel %vm717, %v1017, 0
      %1192 = vmatpush.msra.mxu0 0.0
      %1193 = vmatpush.msra.mxu0 0.0
      %1194 = vmatpush.msra.mxu0 0.0
      %1195 = vmatpush.msra.mxu0 0.0
      %1196 = vmatpush.msra.mxu0 0.0
      %1197 = vmatpush.msra.mxu0 0.0
      %1198 = vmatpush.msra.mxu0 0.0
      %1199 = vmatpush.msra.mxu0 0.0
      %1200 = vmatpush.msra.mxu0 0.0
      %1201 = vmatpush.msra.mxu0 0.0
      %1202 = vmatpush.msra.mxu0 0.0
      %1203 = vmatpush.msra.mxu0 0.0
      %1204 = vmatpush.msra.mxu0 0.0
      %1205 = vmatpush.msra.mxu0 0.0
      %1206 = vmatpush.msra.mxu0 0.0
      %1207 = vmatpush.msra.mxu0 %v1184
      %1208 = vmatmul.f32.gmra.mxu0 %v1187
      %v1209 = vpop.f32.mrf.mxu0
      %v1210 = vadd.f32 0.0, %v1209
      %1211 = vmatmul.f32.gmra.mxu0 %v1190
      %v1212 = vpop.f32.mrf.mxu0
      %v1213 = vadd.f32 0.0, %v1212
      %1214 = vdwg.mxu0
      %v1215 = vadd.f32 %v1181, %v1210
      %v1216 = vadd.f32 %v1182, %v1213
      %1217 = vrot.lane.b32.xlu0 %v1039, 10
      %v1218 = vpop.permute.xlu0 %1217
      %v1220 = vmul.f32 %v1035, %v1218
      %1222 = vrot.lane.b32.xlu0 %v1220, 118
      %v1223 = vpop.permute.xlu0 %1222
      %v1226 = vsel %vm717, %v1018, 0
      %v1229 = vsel %vm717, %v1019, 0
      %1231 = vmatpush.msra.mxu0 0.0
      %1232 = vmatpush.msra.mxu0 0.0
      %1233 = vmatpush.msra.mxu0 0.0
      %1234 = vmatpush.msra.mxu0 0.0
      %1235 = vmatpush.msra.mxu0 0.0
      %1236 = vmatpush.msra.mxu0 0.0
      %1237 = vmatpush.msra.mxu0 0.0
      %1238 = vmatpush.msra.mxu0 0.0
      %1239 = vmatpush.msra.mxu0 0.0
      %1240 = vmatpush.msra.mxu0 0.0
      %1241 = vmatpush.msra.mxu0 0.0
      %1242 = vmatpush.msra.mxu0 0.0
      %1243 = vmatpush.msra.mxu0 0.0
      %1244 = vmatpush.msra.mxu0 0.0
      %1245 = vmatpush.msra.mxu0 0.0
      %1246 = vmatpush.msra.mxu0 %v1223
      %1247 = vmatmul.f32.gmra.mxu0 %v1226
      %v1248 = vpop.f32.mrf.mxu0
      %v1249 = vadd.f32 0.0, %v1248
      %1250 = vmatmul.f32.gmra.mxu0 %v1229
      %v1251 = vpop.f32.mrf.mxu0
      %v1252 = vadd.f32 0.0, %v1251
      %1253 = vdwg.mxu0
      %v1254 = vadd.f32 %v1215, %v1249
      %v1255 = vadd.f32 %v1216, %v1252
      %1256 = vrot.lane.b32.xlu0 %v1037, 16
      %v1257 = vpop.permute.xlu0 %1256
      %v1259 = vmul.f32 %v1035, %v1257
      %1261 = vrot.lane.b32.xlu0 %v1259, 112
      %v1262 = vpop.permute.xlu0 %1261
      %v1265 = vsel %vm717, %v1020, 0
      %v1268 = vsel %vm717, %v1021, 0
      %1270 = vmatpush.msra.mxu0 0.0
      %1271 = vmatpush.msra.mxu0 0.0
      %1272 = vmatpush.msra.mxu0 0.0
      %1273 = vmatpush.msra.mxu0 0.0
      %1274 = vmatpush.msra.mxu0 0.0
      %1275 = vmatpush.msra.mxu0 0.0
      %1276 = vmatpush.msra.mxu0 0.0
      %1277 = vmatpush.msra.mxu0 0.0
      %1278 = vmatpush.msra.mxu0 0.0
      %1279 = vmatpush.msra.mxu0 0.0
      %1280 = vmatpush.msra.mxu0 0.0
      %1281 = vmatpush.msra.mxu0 0.0
      %1282 = vmatpush.msra.mxu0 0.0
      %1283 = vmatpush.msra.mxu0 0.0
      %1284 = vmatpush.msra.mxu0 0.0
      %1285 = vmatpush.msra.mxu0 %v1262
      %1286 = vmatmul.f32.gmra.mxu0 %v1265
      %v1287 = vpop.f32.mrf.mxu0
      %v1288 = vadd.f32 0.0, %v1287
      %1289 = vmatmul.f32.gmra.mxu0 %v1268
      %v1290 = vpop.f32.mrf.mxu0
      %v1291 = vadd.f32 0.0, %v1290
      %1292 = vdwg.mxu0
      %v1293 = vadd.f32 %v1254, %v1288
      %v1294 = vadd.f32 %v1255, %v1291
      %1295 = vrot.lane.b32.xlu0 %v1035, 111
      %v1296 = vpop.permute.xlu0 %1295
      %v1299 = vsel %vm717, %v1022, 0
      %v1302 = vsel %vm717, %v1023, 0
      %1304 = vmatpush.msra.mxu0 0.0
      %1305 = vmatpush.msra.mxu0 0.0
      %1306 = vmatpush.msra.mxu0 0.0
      %1307 = vmatpush.msra.mxu0 0.0
      %1308 = vmatpush.msra.mxu0 0.0
      %1309 = vmatpush.msra.mxu0 0.0
      %1310 = vmatpush.msra.mxu0 0.0
      %1311 = vmatpush.msra.mxu0 0.0
      %1312 = vmatpush.msra.mxu0 0.0
      %1313 = vmatpush.msra.mxu0 0.0
      %1314 = vmatpush.msra.mxu0 0.0
      %1315 = vmatpush.msra.mxu0 0.0
      %1316 = vmatpush.msra.mxu0 0.0
      %1317 = vmatpush.msra.mxu0 0.0
      %1318 = vmatpush.msra.mxu0 0.0
      %1319 = vmatpush.msra.mxu0 %v1296
      %1320 = vmatmul.f32.gmra.mxu0 %v1299
      %v1321 = vpop.f32.mrf.mxu0
      %v1322 = vadd.f32 0.0, %v1321
      %1323 = vmatmul.f32.gmra.mxu0 %v1302
      %v1324 = vpop.f32.mrf.mxu0
      %v1325 = vadd.f32 0.0, %v1324
      %1326 = vdwg.mxu0
      %v1327 = vadd.f32 %v1293, %v1322
      %v1328 = vadd.f32 %v1294, %v1325
      %1329 = vrot.lane.b32.xlu0 %v1039, 18
      %v1330 = vpop.permute.xlu0 %1329
      %v1332 = vmul.f32 %v1035, %v1330
      %1334 = vrot.lane.b32.xlu0 %v1332, 110
      %v1335 = vpop.permute.xlu0 %1334
      %v1338 = vsel %vm717, %v1024, 0
      %v1341 = vsel %vm717, %v1025, 0
      %1343 = vmatpush.msra.mxu0 0.0
      %1344 = vmatpush.msra.mxu0 0.0
      %1345 = vmatpush.msra.mxu0 0.0
      %1346 = vmatpush.msra.mxu0 0.0
      %1347 = vmatpush.msra.mxu0 0.0
      %1348 = vmatpush.msra.mxu0 0.0
      %1349 = vmatpush.msra.mxu0 0.0
      %1350 = vmatpush.msra.mxu0 0.0
      %1351 = vmatpush.msra.mxu0 0.0
      %1352 = vmatpush.msra.mxu0 0.0
      %1353 = vmatpush.msra.mxu0 0.0
      %1354 = vmatpush.msra.mxu0 0.0
      %1355 = vmatpush.msra.mxu0 0.0
      %1356 = vmatpush.msra.mxu0 0.0
      %1357 = vmatpush.msra.mxu0 0.0
      %1358 = vmatpush.msra.mxu0 %v1335
      %1359 = vmatmul.f32.gmra.mxu0 %v1338
      %v1360 = vpop.f32.mrf.mxu0
      %v1361 = vadd.f32 0.0, %v1360
      %1362 = vmatmul.f32.gmra.mxu0 %v1341
      %v1363 = vpop.f32.mrf.mxu0
      %v1364 = vadd.f32 0.0, %v1363
      %1365 = vdwg.mxu0
      %v1366 = vadd.f32 %v1327, %v1361
      %v1367 = vadd.f32 %v1328, %v1364
      %1369 = vset.pattern.permute.xlu0 0
      %1370 = vperm.xlu0 %1369, %v1026
      %v1371 = vpop.permute.xlu0 %1370
      %1374 = vset.pattern.permute.xlu0 0
      %1375 = vperm.xlu0 %1374, %v1027
      %v1376 = vpop.permute.xlu0 %1375
      %v1378 = vadd.f32 %v1366, %v1371
      %v1379 = vadd.f32 %v1367, %v1376
      %v1380 = vmul.f32 %v1378, 0.2
      %v1381 = vmul.f32 %v1379, 0.2
      %v1382 = vmax.f32 %v1378, %v1380
      %v1383 = vmax.f32 %v1379, %v1381
      %v1384 = vld [vmem:[%s7] sm:$0xff]
      %v1385 = vld [vmem:[%s7 + $0x8] sm:$0xff]
      %v1386 = vld [vmem:[%s7 + $0x10] sm:$0xff]
      %v1387 = vld [vmem:[%s7 + $0x18] sm:$0xff]
      %v1388 = vld [vmem:[%s7 + $0x20] sm:$0xff]
      %v1389 = vld [vmem:[%s7 + $0x28] sm:$0xff]
      %v1390 = vld [vmem:[%s7 + $0x30] sm:$0xff]
      %v1391 = vld [vmem:[%s7 + $0x38] sm:$0xff]
      %v1392 = vld [vmem:[%s7 + $0x40] sm:$0xff]
      %v1393 = vld [vmem:[%s7 + $0x48] sm:$0xff]
      %v1394 = vld [vmem:[%s7 + $0x50] sm:$0xff]
      %v1395 = vld [vmem:[%s7 + $0x58] sm:$0xff]
      %v1396 = vld [vmem:[%s7 + $0x60] sm:$0xff]
      %v1397 = vld [vmem:[%s7 + $0x68] sm:$0xff]
      %v1398 = vld [vmem:[%s7 + $0x70] sm:$0xff]
      %v1399 = vld [vmem:[%s7 + $0x78] sm:$0xff]
      %v1400 = vld [vmem:[%s7 + $0x80] sm:$0xff]
      %v1401 = vld [vmem:[%s7 + $0x88] sm:$0xff]
      %v1402 = vld [vmem:[%s8] sm:$0xff]
      %v1403 = vld [vmem:[%s8 + $0x8] sm:$0xff]
      %1406 = vrot.lane.b32.xlu0 %v1382, 9
      %v1407 = vpop.permute.xlu0 %1406
      %1408 = vrot.lane.b32.xlu0 %v1383, 9
      %v1409 = vpop.permute.xlu0 %1408
      %v1412 = vsel %vm1032, 0.0, %v1407
      %v1413 = vsel %vm1032, 0.0, %v1409
      %v1414 = vsel %vm1034, %v1412, 0.0
      %v1415 = vsel %vm1034, %v1413, 0.0
      %v1416 = vmul.f32 %v1414, %v1037
      %v1417 = vmul.f32 %v1415, %v1037
      %1420 = vrot.lane.b32.xlu0 %v1414, 127
      %v1421 = vpop.permute.xlu0 %1420
      %1422 = vrot.lane.b32.xlu0 %v1415, 127
      %v1423 = vpop.permute.xlu0 %1422
      %v1427 = vsel %vm984, %v1386, 0
      %v1430 = vsel %vm984, %v1387, 0
      %1432 = vmatpush.msra.mxu0 0.0
      %1433 = vmatpush.msra.mxu0 0.0
      %1434 = vmatpush.msra.mxu0 0.0
      %1435 = vmatpush.msra.mxu0 0.0
      %1436 = vmatpush.msra.mxu0 0.0
      %1437 = vmatpush.msra.mxu0 0.0
      %1438 = vmatpush.msra.mxu0 0.0
      %1439 = vmatpush.msra.mxu0 0.0
      %1440 = vmatpush.msra.mxu0 0.0
      %1441 = vmatpush.msra.mxu0 0.0
      %1442 = vmatpush.msra.mxu0 0.0
      %1443 = vmatpush.msra.mxu0 0.0
      %1444 = vmatpush.msra.mxu0 0.0
      %1445 = vmatpush.msra.mxu0 0.0
      %1446 = vmatpush.msra.mxu0 %v1423
      %1447 = vmatpush.msra.mxu0 %v1421
      %1448 = vmatmul.f32.gmra.mxu0 %v1427
      %v1449 = vpop.f32.mrf.mxu0
      %v1450 = vadd.f32 0.0, %v1449
      %1451 = vmatmul.f32.gmra.mxu0 %v1430
      %v1452 = vpop.f32.mrf.mxu0
      %v1453 = vadd.f32 0.0, %v1452
      %1454 = vdwg.mxu0
      %v1456 = vsel %vm984, %v1384, 0
      %v1459 = vsel %vm984, %v1385, 0
      %1461 = vmatpush.msra.mxu0 0.0
      %1462 = vmatpush.msra.mxu0 0.0
      %1463 = vmatpush.msra.mxu0 0.0
      %1464 = vmatpush.msra.mxu0 0.0
      %1465 = vmatpush.msra.mxu0 0.0
      %1466 = vmatpush.msra.mxu0 0.0
      %1467 = vmatpush.msra.mxu0 0.0
      %1468 = vmatpush.msra.mxu0 0.0
      %1469 = vmatpush.msra.mxu0 0.0
      %1470 = vmatpush.msra.mxu0 0.0
      %1471 = vmatpush.msra.mxu0 0.0
      %1472 = vmatpush.msra.mxu0 0.0
      %1473 = vmatpush.msra.mxu0 0.0
      %1474 = vmatpush.msra.mxu0 0.0
      %1475 = vmatpush.msra.mxu0 %v1417
      %1476 = vmatpush.msra.mxu0 %v1416
      %1477 = vmatmul.f32.gmra.mxu0 %v1456
      %v1478 = vpop.f32.mrf.mxu0
      %v1479 = vadd.f32 %v1450, %v1478
      %1480 = vmatmul.f32.gmra.mxu0 %v1459
      %v1481 = vpop.f32.mrf.mxu0
      %v1482 = vadd.f32 %v1453, %v1481
      %1483 = vdwg.mxu0
      %v1484 = vmul.f32 %v1414, %v1105
      %v1485 = vmul.f32 %v1415, %v1105
      %1488 = vrot.lane.b32.xlu0 %v1484, 126
      %v1489 = vpop.permute.xlu0 %1488
      %1490 = vrot.lane.b32.xlu0 %v1485, 126
      %v1491 = vpop.permute.xlu0 %1490
      %v1495 = vsel %vm984, %v1388, 0
      %v1498 = vsel %vm984, %v1389, 0
      %1500 = vmatpush.msra.mxu0 0.0
      %1501 = vmatpush.msra.mxu0 0.0
      %1502 = vmatpush.msra.mxu0 0.0
      %1503 = vmatpush.msra.mxu0 0.0
      %1504 = vmatpush.msra.mxu0 0.0
      %1505 = vmatpush.msra.mxu0 0.0
      %1506 = vmatpush.msra.mxu0 0.0
      %1507 = vmatpush.msra.mxu0 0.0
      %1508 = vmatpush.msra.mxu0 0.0
      %1509 = vmatpush.msra.mxu0 0.0
      %1510 = vmatpush.msra.mxu0 0.0
      %1511 = vmatpush.msra.mxu0 0.0
      %1512 = vmatpush.msra.mxu0 0.0
      %1513 = vmatpush.msra.mxu0 0.0
      %1514 = vmatpush.msra.mxu0 %v1491
      %1515 = vmatpush.msra.mxu0 %v1489
      %1516 = vmatmul.f32.gmra.mxu0 %v1495
      %v1517 = vpop.f32.mrf.mxu0
      %v1518 = vadd.f32 0.0, %v1517
      %1519 = vmatmul.f32.gmra.mxu0 %v1498
      %v1520 = vpop.f32.mrf.mxu0
      %v1521 = vadd.f32 0.0, %v1520
      %1522 = vdwg.mxu0
      %v1523 = vadd.f32 %v1479, %v1518
      %v1524 = vadd.f32 %v1482, %v1521
      %v1525 = vmul.f32 %v1414, %v1145
      %v1526 = vmul.f32 %v1415, %v1145
      %1529 = vrot.lane.b32.xlu0 %v1525, 120
      %v1530 = vpop.permute.xlu0 %1529
      %1531 = vrot.lane.b32.xlu0 %v1526, 120
      %v1532 = vpop.permute.xlu0 %1531
      %v1536 = vsel %vm984, %v1390, 0
      %v1539 = vsel %vm984, %v1391, 0
      %1541 = vmatpush.msra.mxu0 0.0
      %1542 = vmatpush.msra.mxu0 0.0
      %1543 = vmatpush.msra.mxu0 0.0
      %1544 = vmatpush.msra.mxu0 0.0
      %1545 = vmatpush.msra.mxu0 0.0
      %1546 = vmatpush.msra.mxu0 0.0
      %1547 = vmatpush.msra.mxu0 0.0
      %1548 = vmatpush.msra.mxu0 0.0
      %1549 = vmatpush.msra.mxu0 0.0
      %1550 = vmatpush.msra.mxu0 0.0
      %1551 = vmatpush.msra.mxu0 0.0
      %1552 = vmatpush.msra.mxu0 0.0
      %1553 = vmatpush.msra.mxu0 0.0
      %1554 = vmatpush.msra.mxu0 0.0
      %1555 = vmatpush.msra.mxu0 %v1532
      %1556 = vmatpush.msra.mxu0 %v1530
      %1557 = vmatmul.f32.gmra.mxu0 %v1536
      %v1558 = vpop.f32.mrf.mxu0
      %v1559 = vadd.f32 0.0, %v1558
      %1560 = vmatmul.f32.gmra.mxu0 %v1539
      %v1561 = vpop.f32.mrf.mxu0
      %v1562 = vadd.f32 0.0, %v1561
      %1563 = vdwg.mxu0
      %v1564 = vadd.f32 %v1523, %v1559
      %v1565 = vadd.f32 %v1524, %v1562
      %1566 = vrot.lane.b32.xlu0 %v1414, 119
      %v1567 = vpop.permute.xlu0 %1566
      %1568 = vrot.lane.b32.xlu0 %v1415, 119
      %v1569 = vpop.permute.xlu0 %1568
      %v1573 = vsel %vm984, %v1392, 0
      %v1576 = vsel %vm984, %v1393, 0
      %1578 = vmatpush.msra.mxu0 0.0
      %1579 = vmatpush.msra.mxu0 0.0
      %1580 = vmatpush.msra.mxu0 0.0
      %1581 = vmatpush.msra.mxu0 0.0
      %1582 = vmatpush.msra.mxu0 0.0
      %1583 = vmatpush.msra.mxu0 0.0
      %1584 = vmatpush.msra.mxu0 0.0
      %1585 = vmatpush.msra.mxu0 0.0
      %1586 = vmatpush.msra.mxu0 0.0
      %1587 = vmatpush.msra.mxu0 0.0
      %1588 = vmatpush.msra.mxu0 0.0
      %1589 = vmatpush.msra.mxu0 0.0
      %1590 = vmatpush.msra.mxu0 0.0
      %1591 = vmatpush.msra.mxu0 0.0
      %1592 = vmatpush.msra.mxu0 %v1569
      %1593 = vmatpush.msra.mxu0 %v1567
      %1594 = vmatmul.f32.gmra.mxu0 %v1573
      %v1595 = vpop.f32.mrf.mxu0
      %v1596 = vadd.f32 0.0, %v1595
      %1597 = vmatmul.f32.gmra.mxu0 %v1576
      %v1598 = vpop.f32.mrf.mxu0
      %v1599 = vadd.f32 0.0, %v1598
      %1600 = vdwg.mxu0
      %v1601 = vadd.f32 %v1564, %v1596
      %v1602 = vadd.f32 %v1565, %v1599
      %v1603 = vmul.f32 %v1414, %v1218
      %v1604 = vmul.f32 %v1415, %v1218
      %1607 = vrot.lane.b32.xlu0 %v1603, 118
      %v1608 = vpop.permute.xlu0 %1607
      %1609 = vrot.lane.b32.xlu0 %v1604, 118
      %v1610 = vpop.permute.xlu0 %1609
      %v1614 = vsel %vm984, %v1394, 0
      %v1617 = vsel %vm984, %v1395, 0
      %1619 = vmatpush.msra.mxu0 0.0
      %1620 = vmatpush.msra.mxu0 0.0
      %1621 = vmatpush.msra.mxu0 0.0
      %1622 = vmatpush.msra.mxu0 0.0
      %1623 = vmatpush.msra.mxu0 0.0
      %1624 = vmatpush.msra.mxu0 0.0
      %1625 = vmatpush.msra.mxu0 0.0
      %1626 = vmatpush.msra.mxu0 0.0
      %1627 = vmatpush.msra.mxu0 0.0
      %1628 = vmatpush.msra.mxu0 0.0
      %1629 = vmatpush.msra.mxu0 0.0
      %1630 = vmatpush.msra.mxu0 0.0
      %1631 = vmatpush.msra.mxu0 0.0
      %1632 = vmatpush.msra.mxu0 0.0
      %1633 = vmatpush.msra.mxu0 %v1610
      %1634 = vmatpush.msra.mxu0 %v1608
      %1635 = vmatmul.f32.gmra.mxu0 %v1614
      %v1636 = vpop.f32.mrf.mxu0
      %v1637 = vadd.f32 0.0, %v1636
      %1638 = vmatmul.f32.gmra.mxu0 %v1617
      %v1639 = vpop.f32.mrf.mxu0
      %v1640 = vadd.f32 0.0, %v1639
      %1641 = vdwg.mxu0
      %v1642 = vadd.f32 %v1601, %v1637
      %v1643 = vadd.f32 %v1602, %v1640
      %v1644 = vmul.f32 %v1414, %v1257
      %v1645 = vmul.f32 %v1415, %v1257
      %1648 = vrot.lane.b32.xlu0 %v1644, 112
      %v1649 = vpop.permute.xlu0 %1648
      %1650 = vrot.lane.b32.xlu0 %v1645, 112
      %v1651 = vpop.permute.xlu0 %1650
      %v1655 = vsel %vm984, %v1396, 0
      %v1658 = vsel %vm984, %v1397, 0
      %1660 = vmatpush.msra.mxu0 0.0
      %1661 = vmatpush.msra.mxu0 0.0
      %1662 = vmatpush.msra.mxu0 0.0
      %1663 = vmatpush.msra.mxu0 0.0
      %1664 = vmatpush.msra.mxu0 0.0
      %1665 = vmatpush.msra.mxu0 0.0
      %1666 = vmatpush.msra.mxu0 0.0
      %1667 = vmatpush.msra.mxu0 0.0
      %1668 = vmatpush.msra.mxu0 0.0
      %1669 = vmatpush.msra.mxu0 0.0
      %1670 = vmatpush.msra.mxu0 0.0
      %1671 = vmatpush.msra.mxu0 0.0
      %1672 = vmatpush.msra.mxu0 0.0
      %1673 = vmatpush.msra.mxu0 0.0
      %1674 = vmatpush.msra.mxu0 %v1651
      %1675 = vmatpush.msra.mxu0 %v1649
      %1676 = vmatmul.f32.gmra.mxu0 %v1655
      %v1677 = vpop.f32.mrf.mxu0
      %v1678 = vadd.f32 0.0, %v1677
      %1679 = vmatmul.f32.gmra.mxu0 %v1658
      %v1680 = vpop.f32.mrf.mxu0
      %v1681 = vadd.f32 0.0, %v1680
      %1682 = vdwg.mxu0
      %v1683 = vadd.f32 %v1642, %v1678
      %v1684 = vadd.f32 %v1643, %v1681
      %1685 = vrot.lane.b32.xlu0 %v1414, 111
      %v1686 = vpop.permute.xlu0 %1685
      %1687 = vrot.lane.b32.xlu0 %v1415, 111
      %v1688 = vpop.permute.xlu0 %1687
      %v1692 = vsel %vm984, %v1398, 0
      %v1695 = vsel %vm984, %v1399, 0
      %1697 = vmatpush.msra.mxu0 0.0
      %1698 = vmatpush.msra.mxu0 0.0
      %1699 = vmatpush.msra.mxu0 0.0
      %1700 = vmatpush.msra.mxu0 0.0
      %1701 = vmatpush.msra.mxu0 0.0
      %1702 = vmatpush.msra.mxu0 0.0
      %1703 = vmatpush.msra.mxu0 0.0
      %1704 = vmatpush.msra.mxu0 0.0
      %1705 = vmatpush.msra.mxu0 0.0
      %1706 = vmatpush.msra.mxu0 0.0
      %1707 = vmatpush.msra.mxu0 0.0
      %1708 = vmatpush.msra.mxu0 0.0
      %1709 = vmatpush.msra.mxu0 0.0
      %1710 = vmatpush.msra.mxu0 0.0
      %1711 = vmatpush.msra.mxu0 %v1688
      %1712 = vmatpush.msra.mxu0 %v1686
      %1713 = vmatmul.f32.gmra.mxu0 %v1692
      %v1714 = vpop.f32.mrf.mxu0
      %v1715 = vadd.f32 0.0, %v1714
      %1716 = vmatmul.f32.gmra.mxu0 %v1695
      %v1717 = vpop.f32.mrf.mxu0
      %v1718 = vadd.f32 0.0, %v1717
      %1719 = vdwg.mxu0
      %v1720 = vadd.f32 %v1683, %v1715
      %v1721 = vadd.f32 %v1684, %v1718
      %v1722 = vmul.f32 %v1414, %v1330
      %v1723 = vmul.f32 %v1415, %v1330
      %1726 = vrot.lane.b32.xlu0 %v1722, 110
      %v1727 = vpop.permute.xlu0 %1726
      %1728 = vrot.lane.b32.xlu0 %v1723, 110
      %v1729 = vpop.permute.xlu0 %1728
      %v1733 = vsel %vm984, %v1400, 0
      %v1736 = vsel %vm984, %v1401, 0
      %1738 = vmatpush.msra.mxu0 0.0
      %1739 = vmatpush.msra.mxu0 0.0
      %1740 = vmatpush.msra.mxu0 0.0
      %1741 = vmatpush.msra.mxu0 0.0
      %1742 = vmatpush.msra.mxu0 0.0
      %1743 = vmatpush.msra.mxu0 0.0
      %1744 = vmatpush.msra.mxu0 0.0
      %1745 = vmatpush.msra.mxu0 0.0
      %1746 = vmatpush.msra.mxu0 0.0
      %1747 = vmatpush.msra.mxu0 0.0
      %1748 = vmatpush.msra.mxu0 0.0
      %1749 = vmatpush.msra.mxu0 0.0
      %1750 = vmatpush.msra.mxu0 0.0
      %1751 = vmatpush.msra.mxu0 0.0
      %1752 = vmatpush.msra.mxu0 %v1729
      %1753 = vmatpush.msra.mxu0 %v1727
      %1754 = vmatmul.f32.gmra.mxu0 %v1733
      %v1755 = vpop.f32.mrf.mxu0
      %v1756 = vadd.f32 0.0, %v1755
      %1757 = vmatmul.f32.gmra.mxu0 %v1736
      %v1758 = vpop.f32.mrf.mxu0
      %v1759 = vadd.f32 0.0, %v1758
      %1760 = vdwg.mxu0
      %v1761 = vadd.f32 %v1720, %v1756
      %v1762 = vadd.f32 %v1721, %v1759
      %1764 = vset.pattern.permute.xlu0 0
      %1765 = vperm.xlu0 %1764, %v1402
      %v1766 = vpop.permute.xlu0 %1765
      %1769 = vset.pattern.permute.xlu0 0
      %1770 = vperm.xlu0 %1769, %v1403
      %v1771 = vpop.permute.xlu0 %1770
      %v1773 = vadd.f32 %v1761, %v1766
      %v1774 = vadd.f32 %v1762, %v1771
      %v1775 = vmul.f32 %v1773, 0.2
      %v1776 = vmul.f32 %v1774, 0.2
      %v1777 = vmax.f32 %v1773, %v1775
      %v1778 = vmax.f32 %v1774, %v1776
      %v1779 = vld [vmem:[%s9] sm:$0x7]
      %v1780 = vld [vmem:[%s10] sm:$0x7]
      %1782 = vset.pattern.permute.xlu0 0
      %1783 = vperm.xlu0 %1782, %v1780
      %v1784 = vpop.permute.xlu0 %1783
      %v1787 = vsel %vm984, %v1779, 0
      %1789 = vmatpush.msra.mxu0 0.0
      %1790 = vmatpush.msra.mxu0 0.0
      %1791 = vmatpush.msra.mxu0 0.0
      %1792 = vmatpush.msra.mxu0 0.0
      %1793 = vmatpush.msra.mxu0 0.0
      %1794 = vmatpush.msra.mxu0 0.0
      %1795 = vmatpush.msra.mxu0 0.0
      %1796 = vmatpush.msra.mxu0 0.0
      %1797 = vmatpush.msra.mxu0 0.0
      %1798 = vmatpush.msra.mxu0 0.0
      %1799 = vmatpush.msra.mxu0 0.0
      %1800 = vmatpush.msra.mxu0 0.0
      %1801 = vmatpush.msra.mxu0 0.0
      %1802 = vmatpush.msra.mxu0 0.0
      %1803 = vmatpush.msra.mxu0 %v1778
      %1804 = vmatpush.msra.mxu0 %v1777
      %1805 = vmatmul.f32.gmra.mxu0 %v1787
      %v1806 = vpop.f32.mrf.mxu0
      %v1807 = vadd.f32 %v1784, %v1806
      %1808 = vdwg.mxu0
      %v1809 = vtanh.pop %v1807
      %vm1810 = vcmask 518144
      %1811 = vst.msk [vmem:[%s381] sm:$0x7] %vm1810, %v1809
      %p1812 = scmp.lt.s32.totalorder %s22, 1
      %s1813 = scalar_select %p1812, %s22, 1
      %s1814 = smul.addr %s1813, 4
      %s1815 = scalar_lea.vmem %s11, %s1814
      // Predicated region
      $region65: #{tpu_custom_call.1} parent=63 // pred_check
        %p1816 = pneg %p276
      $region66: #{tpu_custom_call.1} parent=63 // pred_check_branch
        %1818 = sbr.rel (%p1816) target = $region68
      $region67: #{tpu_custom_call.1} parent=63 // pred_region
        _
      $region68: #{tpu_custom_call.1} parent=63 // pred_fallthru
        _
    $region64: #{tpu_custom_call.1} parent=5 // pred_fallthru
      _
    %p1819 = scmp.le.s32.totalorder 2, %s17
    // Predicated region
    $region69: #{tpu_custom_call.1} parent=5 // pred_check
      %p1820 = pneg %p1819
    $region70: #{tpu_custom_call.1} parent=5 // pred_check_branch
      %1822 = sbr.rel (%p1820) target = $region72
    $region71: #{tpu_custom_call.1} parent=5 // pred_region
      %s1823 = ssub.s32 %s17, 2
      // Predicated region
      $region73: #{tpu_custom_call.1} parent=71 // pred_check
        %p1824 = pneg %p282
      $region74: #{tpu_custom_call.1} parent=71 // pred_check_branch
        %1826 = sbr.rel (%p1824) target = $region76
      $region75: #{tpu_custom_call.1} parent=71 // pred_region
        %p1827 = scmp.lt.s32.totalorder %s23, 1
        %s1828 = scalar_select %p1827, %s23, 1
        %s1829 = smul.addr %s1828, 4
        %s1830 = scalar_lea.vmem %s11, %s1829
      $region76: #{tpu_custom_call.1} parent=71 // pred_fallthru
        _
    $region72: #{tpu_custom_call.1} parent=5 // pred_fallthru
      _
  $region6: #{tpu_custom_call.1} parent=0 // loop_footer
    %s21 = sadd.s32 1, %s17
  $region7: #{tpu_custom_call.1} parent=0 // loop_footer_branch
    %16 = sbr.rel target = $region3
  $region8: #{tpu_custom_call.1} parent=0 // loop_exit
    _

</llo_original>
